<compile_context>
chip_gen: v6e
topology: v6e:2x2x1
jax: 0.10.0
libtpu: 0.0.40
codegen_flags: <defaults>
</compile_context>

<pallas_src>
import functools

import jax
import jax.numpy as jnp
from jax import lax
from jax.experimental import pallas as pl
from jax.experimental.pallas import tpu as pltpu


def _round_up(x, m):
    return (x + m - 1) // m * m


# ----------------------------- Pallas kernel ---------------------------------

def _bigru_chunk_kernel(x_ref, wih_ref, whh_ref, bi_ref, bhn_ref,
                        out_ref, h_ref, gi_ref, *, time_chunk):
    """One time-chunk of the fused (fwd|bwd) GRU recurrence.

    Shapes (all float32), with Bp = padded batch, GP = round_up(2H, 128):
      x_ref   : (TC*Bp, 2E)  fused-step inputs; cols [0:E)=x[t], [E:2E)=x[T-1-t]
      wih_ref : (2E, 3*GP)   gate blocks [r|z|n], each 128 lanes; within a block
                             lanes [0:H) are fwd weights, [H:2H) bwd weights
      whh_ref : (GP, 3*GP)   block-diagonal fwd/bwd hidden weights, gate-fused
      bi_ref  : (1, 3*GP)    r/z biases pre-summed (b_ih+b_hh); n carries b_in
      bhn_ref : (1, GP)      b_hn (kept separate: gated by r)
      out_ref : (Bp, GP)     fused final state [h_fwd | h_bwd] (padded)
      h_ref   : (Bp, GP)     VMEM scratch: recurrent state across grid chunks
      gi_ref  : (TC*Bp,3GP)  VMEM scratch: this chunk's input projection
    """
    Bp, GP = out_ref.shape
    c = pl.program_id(0)

    @pl.when(c == 0)
    def _():
        h_ref[...] = jnp.zeros_like(h_ref)

    # Hoisted input projection: whole chunk, both directions, all three gates,
    # in a single lane-dense MXU matmul (biases folded in).
    gi_ref[...] = (
        jnp.dot(x_ref[...], wih_ref[...], preferred_element_type=jnp.float32)
        + bi_ref[...])

    whh = whh_ref[...]
    # Hoist the bias broadcast out of the loop (JAX does not CSE broadcast_in_dim).
    bhn = jnp.broadcast_to(bhn_ref[...], (Bp, GP))

    def step(t, h):
        row = pl.multiple_of(t * Bp, 8)               # sublane-tile aligned
        gi_t = gi_ref[pl.ds(row, Bp), :]              # (Bp, 3*GP), whole tiles
        # Single block-diagonal hidden matmul covers both directions.
        gh = jnp.dot(h, whh, preferred_element_type=jnp.float32)   # (Bp, 3*GP)
        # Gate slices are 128-lane aligned views.
        r = jax.nn.sigmoid(gi_t[:, :GP] + gh[:, :GP])
        z = jax.nn.sigmoid(gi_t[:, GP:2 * GP] + gh[:, GP:2 * GP])
        n = jnp.tanh(gi_t[:, 2 * GP:] + r * (gh[:, 2 * GP:] + bhn))
        return (1.0 - z) * n + z * h

    h = lax.fori_loop(0, time_chunk, step, h_ref[...],
                      unroll=min(time_chunk, 8))
    h_ref[...] = h
    # Constant output index_map => block stays VMEM-resident across the grid and
    # is flushed to HBM once, after the last chunk.
    out_ref[...] = h


def bigru_final_hidden(x_flat, wih, whh, bi, bhn, *, b_pad, time_chunk):
    """x_flat: (T*b_pad, 2E) f32 fused-step inputs.  Returns (b_pad, GP) f32."""
    TBp, E2 = x_flat.shape
    GP = whh.shape[0]
    G3 = 3 * GP
    T = TBp // b_pad
    assert T % time_chunk == 0, (T, time_chunk)
    num_chunks = T // time_chunk
    rows_per_chunk = time_chunk * b_pad

    flops = (2 * TBp * E2 * G3              # hoisted input projection
             + 2 * T * b_pad * GP * G3      # per-step fused hidden matmul
             + 16 * T * b_pad * GP)         # elementwise gate math
    transcendentals = 3 * T * b_pad * GP    # 2 sigmoid + 1 tanh per step
    bytes_accessed = 4 * (x_flat.size + wih.size + whh.size + bi.size
                          + bhn.size + b_pad * GP)

    kernel = functools.partial(_bigru_chunk_kernel, time_chunk=time_chunk)

    return pl.pallas_call(
        kernel,
        out_shape=jax.ShapeDtypeStruct((b_pad, GP), jnp.float32),
        grid_spec=pltpu.PrefetchScalarGridSpec(
            num_scalar_prefetch=0,
            grid=(num_chunks,),
            in_specs=[
                pl.BlockSpec((rows_per_chunk, E2), lambda c: (c, 0)),  # x chunk
                pl.BlockSpec((E2, G3), lambda c: (0, 0)),              # wih
                pl.BlockSpec((GP, G3), lambda c: (0, 0)),              # whh
                pl.BlockSpec((1, G3), lambda c: (0, 0)),               # bi
                pl.BlockSpec((1, GP), lambda c: (0, 0)),               # bhn
            ],
            out_specs=pl.BlockSpec((b_pad, GP), lambda c: (0, 0)),
            scratch_shapes=[
                pltpu.VMEM((b_pad, GP), jnp.float32),                 # h state
                pltpu.VMEM((rows_per_chunk, G3), jnp.float32),        # gi chunk
            ],
        ),
        compiler_params=pltpu.CompilerParams(
            dimension_semantics=("arbitrary",)),   # chunk axis carries recurrence
        cost_estimate=pl.CostEstimate(
            flops=int(flops),
            transcendentals=int(transcendentals),
            bytes_accessed=int(bytes_accessed)),
    )(x_flat, wih, whh, bi, bhn)


# --------------------------- Weight repacking ---------------------------------

def _pack_kernel_params(params, *, emb_dim, hidden_dim, gate_pad):
    """Repack gate-stacked (3, in, H) PyTorch-layout params into the fused,
    lane-tile-aligned kernel layout. Gate order is PyTorch's [r, z, n]."""
    E, H, GP = emb_dim, hidden_dim, gate_pad
    wih = jnp.zeros((2 * E, 3 * GP), jnp.float32)
    whh = jnp.zeros((GP, 3 * GP), jnp.float32)
    bi = jnp.zeros((1, 3 * GP), jnp.float32)
    bhn = jnp.zeros((1, GP), jnp.float32)
    for g in range(3):
        c0 = g * GP
        # input weights: fwd reads x-cols [0:E), bwd reads x-cols [E:2E)
        wih = wih.at[:E, c0:c0 + H].set(params["wih_f"][g])
        wih = wih.at[E:, c0 + H:c0 + 2 * H].set(params["wih_b"][g])
        # hidden weights: block-diagonal (fwd lanes -> fwd cols, bwd -> bwd)
        whh = whh.at[:H, c0:c0 + H].set(params["whh_f"][g])
        whh = whh.at[H:2 * H, c0 + H:c0 + 2 * H].set(params["whh_b"][g])
        bif, bhf = params["bih_f"][g], params["bhh_f"][g]
        bib, bhb = params["bih_b"][g], params["bhh_b"][g]
        if g < 2:   # r, z: pre-sum b_ih + b_hh into the projection bias
            bi = bi.at[:, c0:c0 + H].set(bif + bhf)
            bi = bi.at[:, c0 + H:c0 + 2 * H].set(bib + bhb)
        else:       # n: only b_in goes into the projection (b_hn is gated by r)
            bi = bi.at[:, c0:c0 + H].set(bif)
            bi = bi.at[:, c0 + H:c0 + 2 * H].set(bib)
    bhn = bhn.at[:, :H].set(params["bhh_f"][2])
    bhn = bhn.at[:, H:2 * H].set(params["bhh_b"][2])
    return wih, whh, bi, bhn


# --------------------------- Module wrapper -----------------------------------

def encoder_rnn_forward(input_seq, embedding_table, params, *, time_chunk=None):
    """Mirrors EncoderRNN.forward (eval mode).

    input_seq: (B, T) int32 token ids.
    Returns (None, hidden) with hidden of shape (1, B, H), matching
    `hidden = hidden[0] + hidden[1]; hidden.unsqueeze(0)`.
    """
    # embedding lookup + eval-mode dropout (identity) -- glue, plain JAX
    embedded = jnp.take(embedding_table, input_seq, axis=0)           # (B, T, E)
    B, T, E = embedded.shape
    H = params["whh_f"].shape[-1]
    GP = _round_up(2 * H, 128)      # 128-lane gate blocks (aligned slices)
    Bp = _round_up(B, 8)            # full sublane tile per timestep

    if time_chunk is None:
        # Largest divisor of T that keeps the per-chunk gi scratch modest.
        time_chunk = max(d for d in range(1, min(T, 128) + 1) if T % d == 0)
    assert T % time_chunk == 0

    # time-major, batch padded to a sublane tile
    x = jnp.transpose(embedded, (1, 0, 2)).astype(jnp.float32)        # (T, B, E)
    x = jnp.pad(x, ((0, 0), (0, Bp - B), (0, 0)))                     # (T, Bp, E)
    # Fused fwd/bwd input: cols [0:E) feed the fwd half of wih, cols [E:2E)
    # (time-reversed x) feed the bwd half -> one matmul yields both directions.
    x_big = jnp.concatenate([x, x[::-1]], axis=-1)                    # (T, Bp, 2E)
    x_flat = x_big.reshape(T * Bp, 2 * E)

    wih, whh, bi, bhn = _pack_kernel_params(
        params, emb_dim=E, hidden_dim=H, gate_pad=GP)

    h_fused = bigru_final_hidden(x_flat, wih, whh, bi, bhn,
                                 b_pad=Bp, time_chunk=time_chunk)     # (Bp, GP)
    hidden = h_fused[:B, :H] + h_fused[:B, H:2 * H]                   # hid[0]+hid[1]
    return None, hidden[None, :, :]                                    # (1, B, H)


# --------------------------- Pure-JAX reference --------------------------------

def _gru_scan_ref(x_tbe, wih, whh, bih, bhh):
    def step(h, x):
        gi_r = x @ wih[0] + bih[0]
        gi_z = x @ wih[1] + bih[1]
        gi_n = x @ wih[2] + bih[2]
        gh_r = h @ whh[0] + bhh[0]
        gh_z = h @ whh[1] + bhh[1]
        gh_n = h @ whh[2] + bhh[2]
        r = jax.nn.sigmoid(gi_r + gh_r)
        z = jax.nn.sigmoid(gi_z + gh_z)
        n = jnp.tanh(gi_n + r * gh_n)
        return (1.0 - z) * n + z * h, None

    B = x_tbe.shape[1]
    H = wih.shape[-1]
    h0 = jnp.zeros((B, H), jnp.float32)
    h_final, _ = lax.scan(step, h0, x_tbe)
    return h_final


def encoder_rnn_reference(input_seq, embedding_table, params):
    embedded = jnp.take(embedding_table, input_seq, axis=0)
    x_tbe = jnp.transpose(embedded, (1, 0, 2)).astype(jnp.float32)
    h_f = _gru_scan_ref(x_tbe, params["wih_f"], params["whh_f"],
                        params["bih_f"], params["bhh_f"])
    h_b = _gru_scan_ref(x_tbe[::-1], params["wih_b"], params["whh_b"],
                        params["bih_b"], params["bhh_b"])
    return (h_f + h_b)[None, :, :]


# ------------------------------------ main -------------------------------------

if __name__ == "__main__":
    # Small shapes consistent with the module.
    VOCAB_SIZE = 50
    EMB_DIM = 16
    HIDDEN_DIM = 32
    BATCH = 2
    SEQ_LEN = 8
    PAD_IDX = 0  # vocab['<pad>']

    key = jax.random.PRNGKey(0)
    k_emb, k1, k2, k3, k4, k5, k6, k7, k8, k_ids = jax.random.split(key, 10)

    # Embedding table (padding row zeroed, as nn.Embedding(padding_idx=...) does).
    embedding_table = 0.1 * jax.random.normal(
        k_emb, (VOCAB_SIZE, EMB_DIM), jnp.float32)
    embedding_table = embedding_table.at[PAD_IDX].set(0.0)

    # Bidirectional GRU params, gate-stacked (3, in, H), PyTorch gate order [r,z,n].
    scale = 1.0 / jnp.sqrt(jnp.float32(HIDDEN_DIM))
    params = {
        "wih_f": scale * jax.random.normal(k1, (3, EMB_DIM, HIDDEN_DIM), jnp.float32),
        "whh_f": scale * jax.random.normal(k2, (3, HIDDEN_DIM, HIDDEN_DIM), jnp.float32),
        "bih_f": scale * jax.random.normal(k3, (3, 1, HIDDEN_DIM), jnp.float32),
        "bhh_f": scale * jax.random.normal(k4, (3, 1, HIDDEN_DIM), jnp.float32),
        "wih_b": scale * jax.random.normal(k5, (3, EMB_DIM, HIDDEN_DIM), jnp.float32),
        "whh_b": scale * jax.random.normal(k6, (3, HIDDEN_DIM, HIDDEN_DIM), jnp.float32),
        "bih_b": scale * jax.random.normal(k7, (3, 1, HIDDEN_DIM), jnp.float32),
        "bhh_b": scale * jax.random.normal(k8, (3, 1, HIDDEN_DIM), jnp.float32),
    }

    input_seq = jax.random.randint(
        k_ids, (BATCH, SEQ_LEN), 0, VOCAB_SIZE, jnp.int32)

    # time_chunk=4 with T=8 exercises the chunked grid (2 chunks) and the
    # cross-chunk recurrent-state carry.
    _, hidden = encoder_rnn_forward(input_seq, embedding_table, params,
                                    time_chunk=4)
    hidden = jax.block_until_ready(hidden)

    hidden_ref = jax.block_until_ready(
        encoder_rnn_reference(input_seq, embedding_table, params))

    assert hidden.shape == (1, BATCH, HIDDEN_DIM), hidden.shape
    # Tolerance covers MXU multi-pass f32 rounding / accumulation-order
    # differences vs the XLA reference; real logic errors are orders larger.
    max_err = float(jnp.max(jnp.abs(hidden - hidden_ref)))
    assert jnp.allclose(hidden, hidden_ref, rtol=2e-3, atol=2e-3), max_err

    print("KERNEL_OK")
</pallas_src>

<mosaic_0001>
module attributes {stable_mosaic.version = 11 : i64} {
  func.func @_bigru_chunk_kernel(%arg0: i32, %arg1: memref<32x32xf32, #tpu.memory_space<vmem>>, %arg2: memref<32x384xf32, #tpu.memory_space<vmem>>, %arg3: memref<128x384xf32, #tpu.memory_space<vmem>>, %arg4: memref<1x384xf32, #tpu.memory_space<vmem>>, %arg5: memref<1x128xf32, #tpu.memory_space<vmem>>, %arg6: memref<8x128xf32, #tpu.memory_space<vmem>>, %arg7: memref<8x128xf32, #tpu.memory_space<vmem>>, %arg8: memref<32x384xf32, #tpu.memory_space<vmem>>) attributes {dimension_semantics = [#tpu.dimension_semantics<arbitrary>], iteration_bounds = array<i64: 2>, scalar_prefetch = 0 : i64, scratch_operands = 2 : i64, tpu.core_type = #tpu.core_type<tc>, window_params = [{transform_indices = @transform_0, window_bounds = array<i64: 32, 32>}, {pipeline_mode = #tpu.pipeline_mode<synchronous>, transform_indices = @transform_1, window_bounds = array<i64: 32, 384>}, {pipeline_mode = #tpu.pipeline_mode<synchronous>, transform_indices = @transform_2, window_bounds = array<i64: 128, 384>}, {pipeline_mode = #tpu.pipeline_mode<synchronous>, transform_indices = @transform_3, window_bounds = array<i64: 1, 384>}, {pipeline_mode = #tpu.pipeline_mode<synchronous>, transform_indices = @transform_4, window_bounds = array<i64: 1, 128>}, {pipeline_mode = #tpu.pipeline_mode<synchronous>, transform_indices = @transform_5, window_bounds = array<i64: 8, 128>}]} {
    %c0_i32 = arith.constant 0 : i32
    %0 = arith.cmpi eq, %arg0, %c0_i32 : i32
    %1 = arith.extui %0 : i1 to i32
    %c0_i32_0 = arith.constant 0 : i32
    %2 = arith.cmpi ne, %1, %c0_i32_0 : i32
    scf.if %2 {
      %cst_42 = arith.constant 0.000000e+00 : f32
      %145 = vector.broadcast %cst_42 : f32 to vector<8x128xf32>
      %c0_43 = arith.constant 0 : index
      %c0_44 = arith.constant 0 : index
      %146 = vector.load %arg7[%c0_43, %c0_44] : memref<8x128xf32, #tpu.memory_space<vmem>>, vector<8x128xf32>
      tpu.vector_store %arg7[%c0_43, %c0_44], %145 {strides = array<i32>} : memref<8x128xf32, #tpu.memory_space<vmem>>, vector<8x128xf32>,
    } else {
    }
    %c0 = arith.constant 0 : index
    %c0_1 = arith.constant 0 : index
    %3 = vector.load %arg1[%c0, %c0_1] : memref<32x32xf32, #tpu.memory_space<vmem>>, vector<32x32xf32>
    %c0_2 = arith.constant 0 : index
    %c0_3 = arith.constant 0 : index
    %4 = vector.load %arg2[%c0_2, %c0_3] : memref<32x384xf32, #tpu.memory_space<vmem>>, vector<32x384xf32>
    %cst = arith.constant dense<0.000000e+00> : vector<32x384xf32>
    %5 = tpu.matmul %3, %4, %cst {dimension_numbers = #tpu.dot_dimension_numbers<[1], [0], [0], [1], [0, 0, 1, 1], [], []>} : vector<32x32xf32>, vector<32x384xf32>, vector<32x384xf32> -> vector<32x384xf32>
    %c0_4 = arith.constant 0 : index
    %c0_5 = arith.constant 0 : index
    %6 = vector.load %arg4[%c0_4, %c0_5] : memref<1x384xf32, #tpu.memory_space<vmem>>, vector<1x384xf32>
    %7 = vector.broadcast %6 : vector<1x384xf32> to vector<32x384xf32>
    %8 = arith.addf %5, %7 : vector<32x384xf32>
    %c0_6 = arith.constant 0 : index
    %c0_7 = arith.constant 0 : index
    %9 = vector.load %arg8[%c0_6, %c0_7] : memref<32x384xf32, #tpu.memory_space<vmem>>, vector<32x384xf32>
    tpu.vector_store %arg8[%c0_6, %c0_7], %8 {strides = array<i32>} : memref<32x384xf32, #tpu.memory_space<vmem>>, vector<32x384xf32>,
    %c0_8 = arith.constant 0 : index
    %c0_9 = arith.constant 0 : index
    %10 = vector.load %arg3[%c0_8, %c0_9] : memref<128x384xf32, #tpu.memory_space<vmem>>, vector<128x384xf32>
    %c0_10 = arith.constant 0 : index
    %c0_11 = arith.constant 0 : index
    %11 = vector.load %arg5[%c0_10, %c0_11] : memref<1x128xf32, #tpu.memory_space<vmem>>, vector<1x128xf32>
    %12 = vector.shape_cast %11 : vector<1x128xf32> to vector<1x128xf32>
    %13 = vector.broadcast %12 : vector<1x128xf32> to vector<8x128xf32>
    %c0_12 = arith.constant 0 : index
    %c0_13 = arith.constant 0 : index
    %14 = vector.load %arg7[%c0_12, %c0_13] : memref<8x128xf32, #tpu.memory_space<vmem>>, vector<8x128xf32>
    %c0_i32_14 = arith.constant 0 : i32
    %c8_i32 = arith.constant 8 : i32
    %15 = arith.muli %c0_i32_14, %c8_i32 : i32
    %16 = tpu.assume_multiple %15, 8 : i32
    %17 = arith.index_cast %16 : i32 to index
    %c0_15 = arith.constant 0 : index
    %18 = vector.load %arg8[%17, %c0_15] : memref<32x384xf32, #tpu.memory_space<vmem>>, vector<8x384xf32>
    %cst_16 = arith.constant dense<0.000000e+00> : vector<8x384xf32>
    %19 = tpu.matmul %14, %10, %cst_16 {dimension_numbers = #tpu.dot_dimension_numbers<[1], [0], [0], [1], [0, 0, 1, 1], [], []>} : vector<8x128xf32>, vector<128x384xf32>, vector<8x384xf32> -> vector<8x384xf32>
    %20 = vector.extract_strided_slice %18 {offsets = [0, 0], sizes = [8, 128], strides = [1, 1]} : vector<8x384xf32> to vector<8x128xf32>
    %21 = vector.extract_strided_slice %19 {offsets = [0, 0], sizes = [8, 128], strides = [1, 1]} : vector<8x384xf32> to vector<8x128xf32>
    %22 = arith.addf %20, %21 : vector<8x128xf32>
    %23 = arith.negf %22 : vector<8x128xf32>
    %24 = math.exp %23 : vector<8x128xf32>
    %cst_17 = arith.constant 1.000000e+00 : f32
    %25 = vector.broadcast %cst_17 : f32 to vector<8x128xf32>
    %26 = arith.addf %25, %24 : vector<8x128xf32>
    %27 = arith.divf %25, %26 : vector<8x128xf32>
    %28 = vector.extract_strided_slice %18 {offsets = [0, 128], sizes = [8, 128], strides = [1, 1]} : vector<8x384xf32> to vector<8x128xf32>
    %29 = vector.extract_strided_slice %19 {offsets = [0, 128], sizes = [8, 128], strides = [1, 1]} : vector<8x384xf32> to vector<8x128xf32>
    %30 = arith.addf %28, %29 : vector<8x128xf32>
    %31 = arith.negf %30 : vector<8x128xf32>
    %32 = math.exp %31 : vector<8x128xf32>
    %cst_18 = arith.constant 1.000000e+00 : f32
    %33 = vector.broadcast %cst_18 : f32 to vector<8x128xf32>
    %34 = arith.addf %33, %32 : vector<8x128xf32>
    %35 = arith.divf %33, %34 : vector<8x128xf32>
    %36 = vector.extract_strided_slice %18 {offsets = [0, 256], sizes = [8, 128], strides = [1, 1]} : vector<8x384xf32> to vector<8x128xf32>
    %37 = vector.extract_strided_slice %19 {offsets = [0, 256], sizes = [8, 128], strides = [1, 1]} : vector<8x384xf32> to vector<8x128xf32>
    %38 = arith.addf %37, %13 : vector<8x128xf32>
    %39 = arith.mulf %27, %38 : vector<8x128xf32>
    %40 = arith.addf %36, %39 : vector<8x128xf32>
    %41 = math.tanh %40 : vector<8x128xf32>
    %cst_19 = arith.constant 1.000000e+00 : f32
    %42 = vector.broadcast %cst_19 : f32 to vector<8x128xf32>
    %43 = arith.subf %42, %35 : vector<8x128xf32>
    %44 = arith.mulf %43, %41 : vector<8x128xf32>
    %45 = arith.mulf %35, %14 : vector<8x128xf32>
    %46 = arith.addf %44, %45 : vector<8x128xf32>
    %c1_i32 = arith.constant 1 : i32
    %c8_i32_20 = arith.constant 8 : i32
    %47 = arith.muli %c1_i32, %c8_i32_20 : i32
    %48 = tpu.assume_multiple %47, 8 : i32
    %49 = arith.index_cast %48 : i32 to index
    %c0_21 = arith.constant 0 : index
    %50 = vector.load %arg8[%49, %c0_21] : memref<32x384xf32, #tpu.memory_space<vmem>>, vector<8x384xf32>
    %cst_22 = arith.constant dense<0.000000e+00> : vector<8x384xf32>
    %51 = tpu.matmul %46, %10, %cst_22 {dimension_numbers = #tpu.dot_dimension_numbers<[1], [0], [0], [1], [0, 0, 1, 1], [], []>} : vector<8x128xf32>, vector<128x384xf32>, vector<8x384xf32> -> vector<8x384xf32>
    %52 = vector.extract_strided_slice %50 {offsets = [0, 0], sizes = [8, 128], strides = [1, 1]} : vector<8x384xf32> to vector<8x128xf32>
    %53 = vector.extract_strided_slice %51 {offsets = [0, 0], sizes = [8, 128], strides = [1, 1]} : vector<8x384xf32> to vector<8x128xf32>
    %54 = arith.addf %52, %53 : vector<8x128xf32>
    %55 = arith.negf %54 : vector<8x128xf32>
    %56 = math.exp %55 : vector<8x128xf32>
    %cst_23 = arith.constant 1.000000e+00 : f32
    %57 = vector.broadcast %cst_23 : f32 to vector<8x128xf32>
    %58 = arith.addf %57, %56 : vector<8x128xf32>
    %59 = arith.divf %57, %58 : vector<8x128xf32>
    %60 = vector.extract_strided_slice %50 {offsets = [0, 128], sizes = [8, 128], strides = [1, 1]} : vector<8x384xf32> to vector<8x128xf32>
    %61 = vector.extract_strided_slice %51 {offsets = [0, 128], sizes = [8, 128], strides = [1, 1]} : vector<8x384xf32> to vector<8x128xf32>
    %62 = arith.addf %60, %61 : vector<8x128xf32>
    %63 = arith.negf %62 : vector<8x128xf32>
    %64 = math.exp %63 : vector<8x128xf32>
    %cst_24 = arith.constant 1.000000e+00 : f32
    %65 = vector.broadcast %cst_24 : f32 to vector<8x128xf32>
    %66 = arith.addf %65, %64 : vector<8x128xf32>
    %67 = arith.divf %65, %66 : vector<8x128xf32>
    %68 = vector.extract_strided_slice %50 {offsets = [0, 256], sizes = [8, 128], strides = [1, 1]} : vector<8x384xf32> to vector<8x128xf32>
    %69 = vector.extract_strided_slice %51 {offsets = [0, 256], sizes = [8, 128], strides = [1, 1]} : vector<8x384xf32> to vector<8x128xf32>
    %70 = arith.addf %69, %13 : vector<8x128xf32>
    %71 = arith.mulf %59, %70 : vector<8x128xf32>
    %72 = arith.addf %68, %71 : vector<8x128xf32>
    %73 = math.tanh %72 : vector<8x128xf32>
    %cst_25 = arith.constant 1.000000e+00 : f32
    %74 = vector.broadcast %cst_25 : f32 to vector<8x128xf32>
    %75 = arith.subf %74, %67 : vector<8x128xf32>
    %76 = arith.mulf %75, %73 : vector<8x128xf32>
    %77 = arith.mulf %67, %46 : vector<8x128xf32>
    %78 = arith.addf %76, %77 : vector<8x128xf32>
    %c2_i32 = arith.constant 2 : i32
    %c8_i32_26 = arith.constant 8 : i32
    %79 = arith.muli %c2_i32, %c8_i32_26 : i32
    %80 = tpu.assume_multiple %79, 8 : i32
    %81 = arith.index_cast %80 : i32 to index
    %c0_27 = arith.constant 0 : index
    %82 = vector.load %arg8[%81, %c0_27] : memref<32x384xf32, #tpu.memory_space<vmem>>, vector<8x384xf32>
    %cst_28 = arith.constant dense<0.000000e+00> : vector<8x384xf32>
    %83 = tpu.matmul %78, %10, %cst_28 {dimension_numbers = #tpu.dot_dimension_numbers<[1], [0], [0], [1], [0, 0, 1, 1], [], []>} : vector<8x128xf32>, vector<128x384xf32>, vector<8x384xf32> -> vector<8x384xf32>
    %84 = vector.extract_strided_slice %82 {offsets = [0, 0], sizes = [8, 128], strides = [1, 1]} : vector<8x384xf32> to vector<8x128xf32>
    %85 = vector.extract_strided_slice %83 {offsets = [0, 0], sizes = [8, 128], strides = [1, 1]} : vector<8x384xf32> to vector<8x128xf32>
    %86 = arith.addf %84, %85 : vector<8x128xf32>
    %87 = arith.negf %86 : vector<8x128xf32>
    %88 = math.exp %87 : vector<8x128xf32>
    %cst_29 = arith.constant 1.000000e+00 : f32
    %89 = vector.broadcast %cst_29 : f32 to vector<8x128xf32>
    %90 = arith.addf %89, %88 : vector<8x128xf32>
    %91 = arith.divf %89, %90 : vector<8x128xf32>
    %92 = vector.extract_strided_slice %82 {offsets = [0, 128], sizes = [8, 128], strides = [1, 1]} : vector<8x384xf32> to vector<8x128xf32>
    %93 = vector.extract_strided_slice %83 {offsets = [0, 128], sizes = [8, 128], strides = [1, 1]} : vector<8x384xf32> to vector<8x128xf32>
    %94 = arith.addf %92, %93 : vector<8x128xf32>
    %95 = arith.negf %94 : vector<8x128xf32>
    %96 = math.exp %95 : vector<8x128xf32>
    %cst_30 = arith.constant 1.000000e+00 : f32
    %97 = vector.broadcast %cst_30 : f32 to vector<8x128xf32>
    %98 = arith.addf %97, %96 : vector<8x128xf32>
    %99 = arith.divf %97, %98 : vector<8x128xf32>
    %100 = vector.extract_strided_slice %82 {offsets = [0, 256], sizes = [8, 128], strides = [1, 1]} : vector<8x384xf32> to vector<8x128xf32>
    %101 = vector.extract_strided_slice %83 {offsets = [0, 256], sizes = [8, 128], strides = [1, 1]} : vector<8x384xf32> to vector<8x128xf32>
    %102 = arith.addf %101, %13 : vector<8x128xf32>
    %103 = arith.mulf %91, %102 : vector<8x128xf32>
    %104 = arith.addf %100, %103 : vector<8x128xf32>
    %105 = math.tanh %104 : vector<8x128xf32>
    %cst_31 = arith.constant 1.000000e+00 : f32
    %106 = vector.broadcast %cst_31 : f32 to vector<8x128xf32>
    %107 = arith.subf %106, %99 : vector<8x128xf32>
    %108 = arith.mulf %107, %105 : vector<8x128xf32>
    %109 = arith.mulf %99, %78 : vector<8x128xf32>
    %110 = arith.addf %108, %109 : vector<8x128xf32>
    %c3_i32 = arith.constant 3 : i32
    %c8_i32_32 = arith.constant 8 : i32
    %111 = arith.muli %c3_i32, %c8_i32_32 : i32
    %112 = tpu.assume_multiple %111, 8 : i32
    %113 = arith.index_cast %112 : i32 to index
    %c0_33 = arith.constant 0 : index
    %114 = vector.load %arg8[%113, %c0_33] : memref<32x384xf32, #tpu.memory_space<vmem>>, vector<8x384xf32>
    %cst_34 = arith.constant dense<0.000000e+00> : vector<8x384xf32>
    %115 = tpu.matmul %110, %10, %cst_34 {dimension_numbers = #tpu.dot_dimension_numbers<[1], [0], [0], [1], [0, 0, 1, 1], [], []>} : vector<8x128xf32>, vector<128x384xf32>, vector<8x384xf32> -> vector<8x384xf32>
    %116 = vector.extract_strided_slice %114 {offsets = [0, 0], sizes = [8, 128], strides = [1, 1]} : vector<8x384xf32> to vector<8x128xf32>
    %117 = vector.extract_strided_slice %115 {offsets = [0, 0], sizes = [8, 128], strides = [1, 1]} : vector<8x384xf32> to vector<8x128xf32>
    %118 = arith.addf %116, %117 : vector<8x128xf32>
    %119 = arith.negf %118 : vector<8x128xf32>
    %120 = math.exp %119 : vector<8x128xf32>
    %cst_35 = arith.constant 1.000000e+00 : f32
    %121 = vector.broadcast %cst_35 : f32 to vector<8x128xf32>
    %122 = arith.addf %121, %120 : vector<8x128xf32>
    %123 = arith.divf %121, %122 : vector<8x128xf32>
    %124 = vector.extract_strided_slice %114 {offsets = [0, 128], sizes = [8, 128], strides = [1, 1]} : vector<8x384xf32> to vector<8x128xf32>
    %125 = vector.extract_strided_slice %115 {offsets = [0, 128], sizes = [8, 128], strides = [1, 1]} : vector<8x384xf32> to vector<8x128xf32>
    %126 = arith.addf %124, %125 : vector<8x128xf32>
    %127 = arith.negf %126 : vector<8x128xf32>
    %128 = math.exp %127 : vector<8x128xf32>
    %cst_36 = arith.constant 1.000000e+00 : f32
    %129 = vector.broadcast %cst_36 : f32 to vector<8x128xf32>
    %130 = arith.addf %129, %128 : vector<8x128xf32>
    %131 = arith.divf %129, %130 : vector<8x128xf32>
    %132 = vector.extract_strided_slice %114 {offsets = [0, 256], sizes = [8, 128], strides = [1, 1]} : vector<8x384xf32> to vector<8x128xf32>
    %133 = vector.extract_strided_slice %115 {offsets = [0, 256], sizes = [8, 128], strides = [1, 1]} : vector<8x384xf32> to vector<8x128xf32>
    %134 = arith.addf %133, %13 : vector<8x128xf32>
    %135 = arith.mulf %123, %134 : vector<8x128xf32>
    %136 = arith.addf %132, %135 : vector<8x128xf32>
    %137 = math.tanh %136 : vector<8x128xf32>
    %cst_37 = arith.constant 1.000000e+00 : f32
    %138 = vector.broadcast %cst_37 : f32 to vector<8x128xf32>
    %139 = arith.subf %138, %131 : vector<8x128xf32>
    %140 = arith.mulf %139, %137 : vector<8x128xf32>
    %141 = arith.mulf %131, %110 : vector<8x128xf32>
    %142 = arith.addf %140, %141 : vector<8x128xf32>
    %c4_i32 = arith.constant 4 : i32
    %c0_38 = arith.constant 0 : index
    %c0_39 = arith.constant 0 : index
    %143 = vector.load %arg7[%c0_38, %c0_39] : memref<8x128xf32, #tpu.memory_space<vmem>>, vector<8x128xf32>
    tpu.vector_store %arg7[%c0_38, %c0_39], %142 {strides = array<i32>} : memref<8x128xf32, #tpu.memory_space<vmem>>, vector<8x128xf32>,
    %c0_40 = arith.constant 0 : index
    %c0_41 = arith.constant 0 : index
    %144 = vector.load %arg6[%c0_40, %c0_41] : memref<8x128xf32, #tpu.memory_space<vmem>>, vector<8x128xf32>
    tpu.vector_store %arg6[%c0_40, %c0_41], %142 {strides = array<i32>} : memref<8x128xf32, #tpu.memory_space<vmem>>, vector<8x128xf32>,
    return
  }
  func.func @transform_0(%arg0: i32) -> (i32, i32) {
    %c0_i32 = arith.constant 0 : i32
    %c0_i32_0 = arith.constant 0 : i32
    return %arg0, %c0_i32 : i32, i32
  }
  func.func @transform_1(%arg0: i32) -> (i32, i32) {
    %c0_i32 = arith.constant 0 : i32
    %c0_i32_0 = arith.constant 0 : i32
    %c0_i32_1 = arith.constant 0 : i32
    return %c0_i32, %c0_i32_0 : i32, i32
  }
  func.func @transform_2(%arg0: i32) -> (i32, i32) {
    %c0_i32 = arith.constant 0 : i32
    %c0_i32_0 = arith.constant 0 : i32
    %c0_i32_1 = arith.constant 0 : i32
    return %c0_i32, %c0_i32_0 : i32, i32
  }
  func.func @transform_3(%arg0: i32) -> (i32, i32) {
    %c0_i32 = arith.constant 0 : i32
    %c0_i32_0 = arith.constant 0 : i32
    %c0_i32_1 = arith.constant 0 : i32
    return %c0_i32, %c0_i32_0 : i32, i32
  }
  func.func @transform_4(%arg0: i32) -> (i32, i32) {
    %c0_i32 = arith.constant 0 : i32
    %c0_i32_0 = arith.constant 0 : i32
    %c0_i32_1 = arith.constant 0 : i32
    return %c0_i32, %c0_i32_0 : i32, i32
  }
  func.func @transform_5(%arg0: i32) -> (i32, i32) {
    %c0_i32 = arith.constant 0 : i32
    %c0_i32_0 = arith.constant 0 : i32
    %c0_i32_1 = arith.constant 0 : i32
    return %c0_i32, %c0_i32_0 : i32, i32
  }
}

</mosaic_0001>

<llo_original>
// kernel: tpu_custom_call.1
$region0: #{tpu_custom_call.1}
  #allocation0 [shape = 'u32[]', space=smem, size = 0x4, offset = 0x4, fixed_abs, tag = 'smem constant byte address 0x4 - core index']
  #allocation1 [shape = 'u32[144,128]{1,0:T(1,128)}', space=vmem, size = 0x12000, scoped, tag = 'internal scratch']
  #allocation2 [shape = 'f32[8,128]{1,0:T(8,128)}', space=vmem, size = 0x1000, scoped, tag = 'scratch operand']
  #allocation3 [shape = 'f32[32,384]{1,0:T(8,128)}', space=vmem, size = 0xc000, scoped, tag = 'scratch operand']
  %s0 = inlined_call_operand.vmem [shape: f32[64,32], index: 0, kind: input, shape index: {}]
  %s1 = inlined_call_operand.vmem [shape: f32[32,384], index: 1, kind: input, shape index: {}]
  %s2 = inlined_call_operand.hbm [shape: f32[128,384], index: 2, kind: input, shape index: {}]
  %s3 = inlined_call_operand.vmem [shape: f32[1,384], index: 3, kind: input, shape index: {}]
  %s4 = inlined_call_operand.vmem [shape: f32[1,128], index: 4, kind: input, shape index: {}]
  %s5 = inlined_call_operand.hbm [shape: f32[8,128], index: 5, kind: output, shape index: {}]
  %s6 = sld [smem:[#allocation0]]
  $region61: #{tpu_custom_call.1} parent=0
    _
  %s8 = ssub.s32 1, %s6
  %s9 = scalar_select 0, %s8, %s6
  $region1: #{tpu_custom_call.1} parent=0
    #allocation4 [shape = 'u8[196608]{0}', space=vmem, size = 0x30000, scoped, tag = 'input window, operand 2, single buffered']
    #allocation5 [shape = 's32[2]{0}', space=sflag, size = 0x8, scoped, tag = 'scoped memory for tpu_custom_call.1']
    #allocation6 [shape = 's32[2]{0}', space=sflag, size = 0x8, scoped, tag = 'scoped memory for tpu_custom_call.1']
    #allocation7 [shape = 'u8[4096]{0}', space=vmem, size = 0x1000, scoped, tag = 'output window, operand 0, single buffered']
    %10 = vsyncpa [#allocation5], 0
    %11 = vsyncpa [#allocation6], 0
    loop: start=0, step=1, limit=4
    $region2: #{tpu_custom_call.1} parent=1 // loop_pre_header
      _
    $region3: #{tpu_custom_call.1} parent=1 // loop_header
      %s13 = sphi 0, %s17
      %p14 = scmp.ge.s32.totalorder %s13, 4
      %s23 = sphi 0, %s25
      %s26 = sphi 0, %s23
      %s27 = sphi 0, %s26
      %s43 = sphi 0, %s27
      %s47 = sphi 0, %s47
      %s49 = sphi 0, %s47
      %s50 = sphi 0, %s49
      %s64 = sphi 0, %s50
      %s68 = sphi 0, %s68
      %s70 = sphi 0, %s68
      %s71 = sphi 0, %s70
      %s85 = sphi 0, %s71
      %s89 = sphi 0, %s89
      %s91 = sphi 0, %s89
      %s92 = sphi 0, %s91
      %s106 = sphi 0, %s92
      %s110 = sphi 0, %s110
      %s112 = sphi 0, %s110
      %s113 = sphi 0, %s112
      %s127 = sphi 0, %s113
      %s131 = sphi 0, %s131
      %s133 = sphi 0, %s131
      %s134 = sphi 0, %s133
      %s148 = sphi 0, %s134
    $region4: #{tpu_custom_call.1} parent=1 // loop_header_branch
      %16 = sbr.rel (%p14) target = $region8
    $region5: #{tpu_custom_call.1} parent=1 // loop_body
      %s18 = ssub.s32 %s13, 1
      %s19 = ssub.s32 %s13, 2
      %s20 = sadd.s32 %s13, 1
      %s21 = ssub.s32 %s13, %s20
      %p22 = scmp.eq.s32.totalorder %s21, 0
      %s24 = sadd.s32 %s23, 1
      %s25 = scalar_select %p22, %s23, %s24
      %p28 = pneg %p22
      %p29 = scmp.eq.s32.totalorder %s13, 1
      %p30 = por %p28, %p29
      %p31 = scmp.ne.s32.totalorder %s23, %s26
      %p32 = scmp.eq.s32.totalorder %s13, 0
      %p33 = por %p31, %p32
      %p34 = scmp.ne.s32.totalorder %s23, %s26
      %p35 = scmp.eq.s32.totalorder %s18, 1
      %p36 = por %p34, %p35
      %p37 = scmp.ne.s32.totalorder %s26, %s27
      %p38 = scmp.eq.s32.totalorder %s18, 0
      %p39 = por %p37, %p38
      %p40 = scmp.ne.s32.totalorder %s26, %s27
      %p41 = scmp.eq.s32.totalorder %s19, 1
      %p42 = por %p40, %p41
      %p44 = scmp.ne.s32.totalorder %s27, %s43
      %p45 = scmp.eq.s32.totalorder %s19, 0
      %p46 = por %p44, %p45
      %s48 = sadd.s32 %s47, 1
      %p51 = scmp.eq.s32.totalorder %s13, 1
      %p52 = scmp.ne.s32.totalorder %s47, %s49
      %p53 = scmp.eq.s32.totalorder %s13, 0
      %p54 = por %p52, %p53
      %p55 = scmp.ne.s32.totalorder %s47, %s49
      %p56 = scmp.eq.s32.totalorder %s18, 1
      %p57 = por %p55, %p56
      %p58 = scmp.ne.s32.totalorder %s49, %s50
      %p59 = scmp.eq.s32.totalorder %s18, 0
      %p60 = por %p58, %p59
      %p61 = scmp.ne.s32.totalorder %s49, %s50
      %p62 = scmp.eq.s32.totalorder %s19, 1
      %p63 = por %p61, %p62
      %p65 = scmp.ne.s32.totalorder %s50, %s64
      %p66 = scmp.eq.s32.totalorder %s19, 0
      %p67 = por %p65, %p66
      %s69 = sadd.s32 %s68, 1
      %p72 = scmp.eq.s32.totalorder %s13, 1
      %p73 = scmp.ne.s32.totalorder %s68, %s70
      %p74 = scmp.eq.s32.totalorder %s13, 0
      %p75 = por %p73, %p74
      %p76 = scmp.ne.s32.totalorder %s68, %s70
      %p77 = scmp.eq.s32.totalorder %s18, 1
      %p78 = por %p76, %p77
      %p79 = scmp.ne.s32.totalorder %s70, %s71
      %p80 = scmp.eq.s32.totalorder %s18, 0
      %p81 = por %p79, %p80
      %p82 = scmp.ne.s32.totalorder %s70, %s71
      %p83 = scmp.eq.s32.totalorder %s19, 1
      %p84 = por %p82, %p83
      %p86 = scmp.ne.s32.totalorder %s71, %s85
      %p87 = scmp.eq.s32.totalorder %s19, 0
      %p88 = por %p86, %p87
      %s90 = sadd.s32 %s89, 1
      %p93 = scmp.eq.s32.totalorder %s13, 1
      %p94 = scmp.ne.s32.totalorder %s89, %s91
      %p95 = scmp.eq.s32.totalorder %s13, 0
      %p96 = por %p94, %p95
      %p97 = scmp.ne.s32.totalorder %s89, %s91
      %p98 = scmp.eq.s32.totalorder %s18, 1
      %p99 = por %p97, %p98
      %p100 = scmp.ne.s32.totalorder %s91, %s92
      %p101 = scmp.eq.s32.totalorder %s18, 0
      %p102 = por %p100, %p101
      %p103 = scmp.ne.s32.totalorder %s91, %s92
      %p104 = scmp.eq.s32.totalorder %s19, 1
      %p105 = por %p103, %p104
      %p107 = scmp.ne.s32.totalorder %s92, %s106
      %p108 = scmp.eq.s32.totalorder %s19, 0
      %p109 = por %p107, %p108
      %s111 = sadd.s32 %s110, 1
      %p114 = scmp.eq.s32.totalorder %s13, 1
      %p115 = scmp.ne.s32.totalorder %s110, %s112
      %p116 = scmp.eq.s32.totalorder %s13, 0
      %p117 = por %p115, %p116
      %p118 = scmp.ne.s32.totalorder %s110, %s112
      %p119 = scmp.eq.s32.totalorder %s18, 1
      %p120 = por %p118, %p119
      %p121 = scmp.ne.s32.totalorder %s112, %s113
      %p122 = scmp.eq.s32.totalorder %s18, 0
      %p123 = por %p121, %p122
      %p124 = scmp.ne.s32.totalorder %s112, %s113
      %p125 = scmp.eq.s32.totalorder %s19, 1
      %p126 = por %p124, %p125
      %p128 = scmp.ne.s32.totalorder %s113, %s127
      %p129 = scmp.eq.s32.totalorder %s19, 0
      %p130 = por %p128, %p129
      %s132 = sadd.s32 %s131, 1
      %p135 = scmp.eq.s32.totalorder %s13, 1
      %p136 = scmp.ne.s32.totalorder %s131, %s133
      %p137 = scmp.eq.s32.totalorder %s13, 0
      %p138 = por %p136, %p137
      %p139 = scmp.ne.s32.totalorder %s131, %s133
      %p140 = scmp.eq.s32.totalorder %s18, 1
      %p141 = por %p139, %p140
      %p142 = scmp.ne.s32.totalorder %s133, %s134
      %p143 = scmp.eq.s32.totalorder %s18, 0
      %p144 = por %p142, %p143
      %p145 = scmp.ne.s32.totalorder %s133, %s134
      %p146 = scmp.eq.s32.totalorder %s19, 1
      %p147 = por %p145, %p146
      %p149 = scmp.ne.s32.totalorder %s134, %s148
      %p150 = scmp.eq.s32.totalorder %s19, 0
      %p151 = por %p149, %p150
      %p152 = scmp.le.s32.totalorder 1, %s13
      %p153 = scmp.lt.s32.totalorder %s13, 3
      %p154 = pnand %p152, %p153
      %p155 = pneg %p154
      // Predicated region
      $region9: #{tpu_custom_call.1} parent=5 // pred_check
        _
      $region10: #{tpu_custom_call.1} parent=5 // pred_check_branch
        %157 = sbr.rel (%p154) target = $region12
      $region11: #{tpu_custom_call.1} parent=5 // pred_region
        %s158 = ssub.s32 %s13, 1
        // Predicated region
        $region13: #{tpu_custom_call.1} parent=11 // pred_check
          %p159 = pneg %p60
        $region14: #{tpu_custom_call.1} parent=11 // pred_check_branch
          %161 = sbr.rel (%p159) target = $region16
        $region15: #{tpu_custom_call.1} parent=11 // pred_region
          _
        $region16: #{tpu_custom_call.1} parent=11 // pred_fallthru
          _
        // Predicated region
        $region17: #{tpu_custom_call.1} parent=11 // pred_check
          %p162 = pneg %p81
        $region18: #{tpu_custom_call.1} parent=11 // pred_check_branch
          %164 = sbr.rel (%p162) target = $region20
        $region19: #{tpu_custom_call.1} parent=11 // pred_region
          %s166 = ssub.s32 6144, 6144
          %167 = vsyncadd [#allocation5], %s166
          %s168 = sshll.u32 [#allocation4], 4
          %s169 = int_to_ptr.vmem [resolvable:$true] %s168
          %174 = dma.hbm_to_vmem [thread:$0]  %s2, 6144, %s169, [#allocation5], 384, 384, 24
        $region20: #{tpu_custom_call.1} parent=11 // pred_fallthru
          _
        // Predicated region
        $region21: #{tpu_custom_call.1} parent=11 // pred_check
          %p175 = pneg %p102
        $region22: #{tpu_custom_call.1} parent=11 // pred_check_branch
          %177 = sbr.rel (%p175) target = $region24
        $region23: #{tpu_custom_call.1} parent=11 // pred_region
          _
        $region24: #{tpu_custom_call.1} parent=11 // pred_fallthru
          _
        // Predicated region
        $region25: #{tpu_custom_call.1} parent=11 // pred_check
          %p178 = pneg %p123
        $region26: #{tpu_custom_call.1} parent=11 // pred_check_branch
          %180 = sbr.rel (%p178) target = $region28
        $region27: #{tpu_custom_call.1} parent=11 // pred_region
          _
        $region28: #{tpu_custom_call.1} parent=11 // pred_fallthru
          _
      $region12: #{tpu_custom_call.1} parent=5 // pred_fallthru
        _
      %p181 = scmp.lt.s32.totalorder %s13, 2
      // Predicated region
      $region29: #{tpu_custom_call.1} parent=5 // pred_check
        %p182 = pneg %p181
      $region30: #{tpu_custom_call.1} parent=5 // pred_check_branch
        %184 = sbr.rel (%p182) target = $region32
      $region31: #{tpu_custom_call.1} parent=5 // pred_region
        // Predicated region
        $region33: #{tpu_custom_call.1} parent=31 // pred_check
          %p185 = pneg %p33
        $region34: #{tpu_custom_call.1} parent=31 // pred_check_branch
          %187 = sbr.rel (%p185) target = $region36
        $region35: #{tpu_custom_call.1} parent=31 // pred_region
          %s188 = smul.u32 4, %s13
          %p189 = scmp.lt.s32.totalorder %s188, 7
          %s190 = scalar_select %p189, %s188, 7
          %s191 = smul.addr %s190, 8
          %s192 = scalar_lea.vmem %s0, %s191
          %s193 = smul.u32 4, %s13
        $region36: #{tpu_custom_call.1} parent=31 // pred_fallthru
          _
      $region32: #{tpu_custom_call.1} parent=5 // pred_fallthru
        _
      %p194 = scmp.le.s32.totalorder 1, %s13
      %p195 = scmp.lt.s32.totalorder %s13, 3
      %p196 = pnand %p194, %p195
      %p197 = pneg %p196
      // Predicated region
      $region37: #{tpu_custom_call.1} parent=5 // pred_check
        _
      $region38: #{tpu_custom_call.1} parent=5 // pred_check_branch
        %199 = sbr.rel (%p196) target = $region40
      $region39: #{tpu_custom_call.1} parent=5 // pred_region
        %s200 = ssub.s32 %s13, 1
        // Predicated region
        $region41: #{tpu_custom_call.1} parent=39 // pred_check
          %p201 = pneg %p81
        $region42: #{tpu_custom_call.1} parent=39 // pred_check_branch
          %203 = sbr.rel (%p201) target = $region44
        $region43: #{tpu_custom_call.1} parent=39 // pred_region
          %204 = dma.done [#allocation5], 6144
        $region44: #{tpu_custom_call.1} parent=39 // pred_fallthru
          _
        %s205 = smul.u32 4, %s18
        %p206 = scmp.lt.s32.totalorder %s205, 7
        %s207 = scalar_select %p206, %s205, 7
        %s208 = smul.addr %s207, 8
        %s209 = scalar_lea.vmem %s0, %s208
        %p210 = pneg %p39
        %p211 = pneg %p36
        %p212 = pneg %p60
        %p213 = pneg %p57
        %p214 = pneg %p81
        %p215 = pneg %p78
        %p216 = pneg %p102
        %p217 = pneg %p99
        %p218 = pneg %p123
        %p219 = pneg %p120
        %p220 = pneg %p144
        %p221 = pneg %p141
        %s222 = smul.u32 4, %s18
        %p223 = scmp.lt.s32.totalorder %s222, 7
        %s224 = scalar_select %p223, %s222, 7
        %s225 = smul.addr %s224, 8
        %s226 = scalar_lea.vmem %s0, %s225
        %s227 = smul.u32 4, %s18
        %p228 = scmp.eq.s32.totalorder %s18, 0
        // Predicated region
        $region45: #{tpu_custom_call.1} parent=39 // pred_check
          %p229 = pneg %p228
        $region46: #{tpu_custom_call.1} parent=39 // pred_check_branch
          %231 = sbr.rel (%p229) target = $region48
        $region47: #{tpu_custom_call.1} parent=39 // pred_region
          %232 = vst [vmem:[#allocation2] sm:$0xff] 0.0
        $region48: #{tpu_custom_call.1} parent=39 // pred_fallthru
          _
        %v233 = vld [vmem:[%s226] sm:$0xff]
        %v234 = vld [vmem:[%s226 + $0x8] sm:$0xff]
        %v235 = vld [vmem:[%s226 + $0x10] sm:$0xff]
        %v236 = vld [vmem:[%s226 + $0x18] sm:$0xff]
        %v237 = vld [vmem:[%s1] sm:$0xff]
        %v238 = vld [vmem:[%s1 + $0x8] sm:$0xff]
        %v239 = vld [vmem:[%s1 + $0x10] sm:$0xff]
        %v240 = vld [vmem:[%s1 + $0x18] sm:$0xff]
        %v241 = vld [vmem:[%s1 + $0x20] sm:$0xff]
        %v242 = vld [vmem:[%s1 + $0x28] sm:$0xff]
        %v243 = vld [vmem:[%s1 + $0x30] sm:$0xff]
        %v244 = vld [vmem:[%s1 + $0x38] sm:$0xff]
        %v245 = vld [vmem:[%s1 + $0x40] sm:$0xff]
        %v246 = vld [vmem:[%s1 + $0x48] sm:$0xff]
        %v247 = vld [vmem:[%s1 + $0x50] sm:$0xff]
        %v248 = vld [vmem:[%s1 + $0x58] sm:$0xff]
        %v249 = vld [vmem:[%s3] sm:$0x7]
        %v251 = vlaneseq
        %v252 = vshrl.u32 %v251, 7
        %v253 = vsub.s32 0, %v252
        %v254 = vrot.slane %v249, %v253
        %v255 = vlaneseq
        %v256 = vshrl.u32 %v255, 7
        %v257 = vsub.s32 1, %v256
        %v258 = vrot.slane %v249, %v257
        %v259 = vlaneseq
        %v260 = vshrl.u32 %v259, 7
        %v261 = vsub.s32 2, %v260
        %v262 = vrot.slane %v249, %v261
        %vm266 = vcmask 261120
        %v268 = vsel %vm266, %v233, 0
        %v271 = vsel %vm266, %v234, 0
        %v274 = vsel %vm266, %v235, 0
        %v277 = vsel %vm266, %v236, 0
        %279 = vmatprep.subr.mxu0 0.0
        %280 = vmatpush1.msra.mxu0 0.0
        %281 = vmatprep.subr.mxu0 0.0
        %282 = vmatpush1.msra.mxu0 0.0
        %283 = vmatprep.subr.mxu0 0.0
        %284 = vmatpush1.msra.mxu0 0.0
        %285 = vmatprep.subr.mxu0 0.0
        %286 = vmatpush1.msra.mxu0 0.0
        %287 = vmatprep.subr.mxu0 0.0
        %288 = vmatpush1.msra.mxu0 0.0
        %289 = vmatprep.subr.mxu0 0.0
        %290 = vmatpush1.msra.mxu0 0.0
        %291 = vmatprep.subr.mxu0 0.0
        %292 = vmatpush1.msra.mxu0 0.0
        %293 = vmatprep.subr.mxu0 0.0
        %294 = vmatpush1.msra.mxu0 0.0
        %295 = vmatprep.subr.mxu0 0.0
        %296 = vmatpush1.msra.mxu0 0.0
        %297 = vmatprep.subr.mxu0 0.0
        %298 = vmatpush1.msra.mxu0 0.0
        %299 = vmatprep.subr.mxu0 0.0
        %300 = vmatpush1.msra.mxu0 0.0
        %301 = vmatprep.subr.mxu0 0.0
        %302 = vmatpush1.msra.mxu0 0.0
        %303 = vmatprep.subr.mxu0 %v247
        %304 = vmatpush1.msra.mxu0 %v246
        %305 = vmatprep.subr.mxu0 %v244
        %306 = vmatpush1.msra.mxu0 %v243
        %307 = vmatprep.subr.mxu0 %v241
        %308 = vmatpush1.msra.mxu0 %v240
        %309 = vmatprep.subr.mxu0 %v238
        %310 = vmatpush1.msra.mxu0 %v237
        %311 = vmatprep.subr.mxu0 0.0
        %312 = vmatpush2.msra.mxu0 0.0
        %313 = vmatprep.subr.mxu0 0.0
        %314 = vmatpush2.msra.mxu0 0.0
        %315 = vmatprep.subr.mxu0 0.0
        %316 = vmatpush2.msra.mxu0 0.0
        %317 = vmatprep.subr.mxu0 0.0
        %318 = vmatpush2.msra.mxu0 0.0
        %319 = vmatprep.subr.mxu0 0.0
        %320 = vmatpush2.msra.mxu0 0.0
        %321 = vmatprep.subr.mxu0 0.0
        %322 = vmatpush2.msra.mxu0 0.0
        %323 = vmatprep.subr.mxu0 0.0
        %324 = vmatpush2.msra.mxu0 0.0
        %325 = vmatprep.subr.mxu0 0.0
        %326 = vmatpush2.msra.mxu0 0.0
        %327 = vmatprep.subr.mxu0 0.0
        %328 = vmatpush2.msra.mxu0 0.0
        %329 = vmatprep.subr.mxu0 0.0
        %330 = vmatpush2.msra.mxu0 0.0
        %331 = vmatprep.subr.mxu0 0.0
        %332 = vmatpush2.msra.mxu0 0.0
        %333 = vmatprep.subr.mxu0 0.0
        %334 = vmatpush2.msra.mxu0 0.0
        %335 = vmatprep.subr.mxu0 0.0
        %336 = vmatpush2.msra.mxu0 0.0
        %337 = vmatprep.subr.mxu0 0.0
        %338 = vmatpush2.msra.mxu0 0.0
        %339 = vmatprep.subr.mxu0 0.0
        %340 = vmatpush2.msra.mxu0 0.0
        %341 = vmatprep.subr.mxu0 0.0
        %342 = vmatpush2.msra.mxu0 0.0
        %343 = vmatprep.mubr.f32.mxu0 0.0
        %344 = vmatmul.mubr.f32.gmra.mxu0 %v268
        %v345 = vpop.f32.mrf.mxu0
        %v346 = vadd.f32 %v254, %v345
        %v347 = vpop.f32.mrf.mxu0
        %v348 = vadd.f32 %v258, %v347
        %349 = vmatprep.mubr.f32.mxu0 0.0
        %350 = vmatmul.mubr.f32.gmra.mxu0 %v271
        %v351 = vpop.f32.mrf.mxu0
        %v352 = vadd.f32 %v254, %v351
        %v353 = vpop.f32.mrf.mxu0
        %v354 = vadd.f32 %v258, %v353
        %355 = vmatprep.mubr.f32.mxu0 0.0
        %356 = vmatmul.mubr.f32.gmra.mxu0 %v274
        %v357 = vpop.f32.mrf.mxu0
        %v358 = vadd.f32 %v254, %v357
        %v359 = vpop.f32.mrf.mxu0
        %v360 = vadd.f32 %v258, %v359
        %361 = vmatprep.mubr.f32.mxu0 0.0
        %362 = vmatmul.mubr.f32.gmra.mxu0 %v277
        %v363 = vpop.f32.mrf.mxu0
        %v364 = vadd.f32 %v254, %v363
        %v365 = vpop.f32.mrf.mxu0
        %v366 = vadd.f32 %v258, %v365
        %367 = vdwg.mxu0
        %368 = vmatprep.subr.mxu0 0.0
        %369 = vmatpush1.msra.mxu0 0.0
        %370 = vmatprep.subr.mxu0 0.0
        %371 = vmatpush1.msra.mxu0 0.0
        %372 = vmatprep.subr.mxu0 0.0
        %373 = vmatpush1.msra.mxu0 0.0
        %374 = vmatprep.subr.mxu0 0.0
        %375 = vmatpush1.msra.mxu0 0.0
        %376 = vmatprep.subr.mxu0 0.0
        %377 = vmatpush1.msra.mxu0 0.0
        %378 = vmatprep.subr.mxu0 0.0
        %379 = vmatpush1.msra.mxu0 0.0
        %380 = vmatprep.subr.mxu0 0.0
        %381 = vmatpush1.msra.mxu0 0.0
        %382 = vmatprep.subr.mxu0 0.0
        %383 = vmatpush1.msra.mxu0 0.0
        %384 = vmatprep.subr.mxu0 0.0
        %385 = vmatpush1.msra.mxu0 0.0
        %386 = vmatprep.subr.mxu0 0.0
        %387 = vmatpush1.msra.mxu0 0.0
        %388 = vmatprep.subr.mxu0 0.0
        %389 = vmatpush1.msra.mxu0 0.0
        %390 = vmatprep.subr.mxu0 0.0
        %391 = vmatpush1.msra.mxu0 0.0
        %392 = vmatprep.subr.mxu0 0.0
        %393 = vmatpush1.msra.mxu0 %v248
        %394 = vmatprep.subr.mxu0 0.0
        %395 = vmatpush1.msra.mxu0 %v245
        %396 = vmatprep.subr.mxu0 0.0
        %397 = vmatpush1.msra.mxu0 %v242
        %398 = vmatprep.subr.mxu0 0.0
        %399 = vmatpush1.msra.mxu0 %v239
        %400 = vmatprep.subr.mxu0 0.0
        %401 = vmatpush2.msra.mxu0 0.0
        %402 = vmatprep.subr.mxu0 0.0
        %403 = vmatpush2.msra.mxu0 0.0
        %404 = vmatprep.subr.mxu0 0.0
        %405 = vmatpush2.msra.mxu0 0.0
        %406 = vmatprep.subr.mxu0 0.0
        %407 = vmatpush2.msra.mxu0 0.0
        %408 = vmatprep.subr.mxu0 0.0
        %409 = vmatpush2.msra.mxu0 0.0
        %410 = vmatprep.subr.mxu0 0.0
        %411 = vmatpush2.msra.mxu0 0.0
        %412 = vmatprep.subr.mxu0 0.0
        %413 = vmatpush2.msra.mxu0 0.0
        %414 = vmatprep.subr.mxu0 0.0
        %415 = vmatpush2.msra.mxu0 0.0
        %416 = vmatprep.subr.mxu0 0.0
        %417 = vmatpush2.msra.mxu0 0.0
        %418 = vmatprep.subr.mxu0 0.0
        %419 = vmatpush2.msra.mxu0 0.0
        %420 = vmatprep.subr.mxu0 0.0
        %421 = vmatpush2.msra.mxu0 0.0
        %422 = vmatprep.subr.mxu0 0.0
        %423 = vmatpush2.msra.mxu0 0.0
        %424 = vmatprep.subr.mxu0 0.0
        %425 = vmatpush2.msra.mxu0 0.0
        %426 = vmatprep.subr.mxu0 0.0
        %427 = vmatpush2.msra.mxu0 0.0
        %428 = vmatprep.subr.mxu0 0.0
        %429 = vmatpush2.msra.mxu0 0.0
        %430 = vmatprep.subr.mxu0 0.0
        %431 = vmatpush2.msra.mxu0 0.0
        %432 = vmatprep.mubr.f32.mxu0 0.0
        %433 = vmatmul.mubr.f32.gmra.mxu0 %v268
        %v434 = vpop.f32.mrf.mxu0
        %v435 = vadd.f32 %v262, %v434
        %v436 = vpop.f32.mrf.mxu0
        %437 = vmatprep.mubr.f32.mxu0 0.0
        %438 = vmatmul.mubr.f32.gmra.mxu0 %v271
        %v439 = vpop.f32.mrf.mxu0
        %v440 = vadd.f32 %v262, %v439
        %v441 = vpop.f32.mrf.mxu0
        %442 = vmatprep.mubr.f32.mxu0 0.0
        %443 = vmatmul.mubr.f32.gmra.mxu0 %v274
        %v444 = vpop.f32.mrf.mxu0
        %v445 = vadd.f32 %v262, %v444
        %v446 = vpop.f32.mrf.mxu0
        %447 = vmatprep.mubr.f32.mxu0 0.0
        %448 = vmatmul.mubr.f32.gmra.mxu0 %v277
        %v449 = vpop.f32.mrf.mxu0
        %v450 = vadd.f32 %v262, %v449
        %v451 = vpop.f32.mrf.mxu0
        %452 = vdwg.mxu0
        %453 = vst [vmem:[#allocation3] sm:$0xff] %v346
        %454 = vst [vmem:[#allocation3 + $0x8] sm:$0xff] %v348
        %455 = vst [vmem:[#allocation3 + $0x10] sm:$0xff] %v435
        %456 = vst [vmem:[#allocation3 + $0x18] sm:$0xff] %v352
        %457 = vst [vmem:[#allocation3 + $0x20] sm:$0xff] %v354
        %458 = vst [vmem:[#allocation3 + $0x28] sm:$0xff] %v440
        %459 = vst [vmem:[#allocation3 + $0x30] sm:$0xff] %v358
        %460 = vst [vmem:[#allocation3 + $0x38] sm:$0xff] %v360
        %461 = vst [vmem:[#allocation3 + $0x40] sm:$0xff] %v445
        %462 = vst [vmem:[#allocation3 + $0x48] sm:$0xff] %v364
        %463 = vst [vmem:[#allocation3 + $0x50] sm:$0xff] %v366
        %464 = vst [vmem:[#allocation3 + $0x58] sm:$0xff] %v450
        %v465 = vld [vmem:[#allocation4] sm:$0xff]
        %v466 = vld [vmem:[#allocation4 + $0x8] sm:$0xff]
        %v467 = vld [vmem:[#allocation4 + $0x10] sm:$0xff]
        %v468 = vld [vmem:[#allocation4 + $0x18] sm:$0xff]
        %v469 = vld [vmem:[#allocation4 + $0x20] sm:$0xff]
        %v470 = vld [vmem:[#allocation4 + $0x28] sm:$0xff]
        %v471 = vld [vmem:[#allocation4 + $0x30] sm:$0xff]
        %v472 = vld [vmem:[#allocation4 + $0x38] sm:$0xff]
        %v473 = vld [vmem:[#allocation4 + $0x40] sm:$0xff]
        %v474 = vld [vmem:[#allocation4 + $0x48] sm:$0xff]
        %v475 = vld [vmem:[#allocation4 + $0x50] sm:$0xff]
        %v476 = vld [vmem:[#allocation4 + $0x58] sm:$0xff]
        %v477 = vld [vmem:[#allocation4 + $0x60] sm:$0xff]
        %v478 = vld [vmem:[#allocation4 + $0x68] sm:$0xff]
        %v479 = vld [vmem:[#allocation4 + $0x70] sm:$0xff]
        %v480 = vld [vmem:[#allocation4 + $0x78] sm:$0xff]
        %v481 = vld [vmem:[#allocation4 + $0x80] sm:$0xff]
        %v482 = vld [vmem:[#allocation4 + $0x88] sm:$0xff]
        %v483 = vld [vmem:[#allocation4 + $0x90] sm:$0xff]
        %v484 = vld [vmem:[#allocation4 + $0x98] sm:$0xff]
        %v485 = vld [vmem:[#allocation4 + $0xa0] sm:$0xff]
        %v486 = vld [vmem:[#allocation4 + $0xa8] sm:$0xff]
        %v487 = vld [vmem:[#allocation4 + $0xb0] sm:$0xff]
        %v488 = vld [vmem:[#allocation4 + $0xb8] sm:$0xff]
        %v489 = vld [vmem:[#allocation4 + $0xc0] sm:$0xff]
        %v490 = vld [vmem:[#allocation4 + $0xc8] sm:$0xff]
        %v491 = vld [vmem:[#allocation4 + $0xd0] sm:$0xff]
        %v492 = vld [vmem:[#allocation4 + $0xd8] sm:$0xff]
        %v493 = vld [vmem:[#allocation4 + $0xe0] sm:$0xff]
        %v494 = vld [vmem:[#allocation4 + $0xe8] sm:$0xff]
        %v495 = vld [vmem:[#allocation4 + $0xf0] sm:$0xff]
        %v496 = vld [vmem:[#allocation4 + $0xf8] sm:$0xff]
        %v497 = vld [vmem:[#allocation4 + $0x100] sm:$0xff]
        %v498 = vld [vmem:[#allocation4 + $0x108] sm:$0xff]
        %v499 = vld [vmem:[#allocation4 + $0x110] sm:$0xff]
        %v500 = vld [vmem:[#allocation4 + $0x118] sm:$0xff]
        %v501 = vld [vmem:[#allocation4 + $0x120] sm:$0xff]
        %v502 = vld [vmem:[#allocation4 + $0x128] sm:$0xff]
        %v503 = vld [vmem:[#allocation4 + $0x130] sm:$0xff]
        %v504 = vld [vmem:[#allocation4 + $0x138] sm:$0xff]
        %v505 = vld [vmem:[#allocation4 + $0x140] sm:$0xff]
        %v506 = vld [vmem:[#allocation4 + $0x148] sm:$0xff]
        %v507 = vld [vmem:[#allocation4 + $0x150] sm:$0xff]
        %v508 = vld [vmem:[#allocation4 + $0x158] sm:$0xff]
        %v509 = vld [vmem:[#allocation4 + $0x160] sm:$0xff]
        %v510 = vld [vmem:[#allocation4 + $0x168] sm:$0xff]
        %v511 = vld [vmem:[#allocation4 + $0x170] sm:$0xff]
        %v512 = vld [vmem:[#allocation4 + $0x178] sm:$0xff]
        %v513 = vld [vmem:[%s4] sm:$0x1]
        %v515 = vlaneseq
        %v516 = vshrl.u32 %v515, 7
        %v517 = vsub.s32 0, %v516
        %v518 = vrot.slane %v513, %v517
        %v520 = vld [vmem:[#allocation2] sm:$0xff]
        %s521 = smul.u32 0, 3
        %s522 = smul.addr %s521, 8
        %s523 = scalar_lea.vmem [#allocation3], %s522
        %v524 = vld [vmem:[%s523] sm:$0xff]
        %v525 = vld [vmem:[%s523 + $0x8] sm:$0xff]
        %v526 = vld [vmem:[%s523 + $0x10] sm:$0xff]
        %527 = vmatprep.subr.mxu0 %v511
        %528 = vmatpush1.msra.mxu0 %v510
        %529 = vmatprep.subr.mxu0 %v508
        %530 = vmatpush1.msra.mxu0 %v507
        %531 = vmatprep.subr.mxu0 %v505
        %532 = vmatpush1.msra.mxu0 %v504
        %533 = vmatprep.subr.mxu0 %v502
        %534 = vmatpush1.msra.mxu0 %v501
        %535 = vmatprep.subr.mxu0 %v499
        %536 = vmatpush1.msra.mxu0 %v498
        %537 = vmatprep.subr.mxu0 %v496
        %538 = vmatpush1.msra.mxu0 %v495
        %539 = vmatprep.subr.mxu0 %v493
        %540 = vmatpush1.msra.mxu0 %v492
        %541 = vmatprep.subr.mxu0 %v490
        %542 = vmatpush1.msra.mxu0 %v489
        %543 = vmatprep.subr.mxu0 %v487
        %544 = vmatpush1.msra.mxu0 %v486
        %545 = vmatprep.subr.mxu0 %v484
        %546 = vmatpush1.msra.mxu0 %v483
        %547 = vmatprep.subr.mxu0 %v481
        %548 = vmatpush1.msra.mxu0 %v480
        %549 = vmatprep.subr.mxu0 %v478
        %550 = vmatpush1.msra.mxu0 %v477
        %551 = vmatprep.subr.mxu0 %v475
        %552 = vmatpush1.msra.mxu0 %v474
        %553 = vmatprep.subr.mxu0 %v472
        %554 = vmatpush1.msra.mxu0 %v471
        %555 = vmatprep.subr.mxu0 %v469
        %556 = vmatpush1.msra.mxu0 %v468
        %557 = vmatprep.subr.mxu0 %v466
        %558 = vmatpush1.msra.mxu0 %v465
        %559 = vmatprep.subr.mxu0 0.0
        %560 = vmatpush2.msra.mxu0 0.0
        %561 = vmatprep.subr.mxu0 0.0
        %562 = vmatpush2.msra.mxu0 0.0
        %563 = vmatprep.subr.mxu0 0.0
        %564 = vmatpush2.msra.mxu0 0.0
        %565 = vmatprep.subr.mxu0 0.0
        %566 = vmatpush2.msra.mxu0 0.0
        %567 = vmatprep.subr.mxu0 0.0
        %568 = vmatpush2.msra.mxu0 0.0
        %569 = vmatprep.subr.mxu0 0.0
        %570 = vmatpush2.msra.mxu0 0.0
        %571 = vmatprep.subr.mxu0 0.0
        %572 = vmatpush2.msra.mxu0 0.0
        %573 = vmatprep.subr.mxu0 0.0
        %574 = vmatpush2.msra.mxu0 0.0
        %575 = vmatprep.subr.mxu0 0.0
        %576 = vmatpush2.msra.mxu0 0.0
        %577 = vmatprep.subr.mxu0 0.0
        %578 = vmatpush2.msra.mxu0 0.0
        %579 = vmatprep.subr.mxu0 0.0
        %580 = vmatpush2.msra.mxu0 0.0
        %581 = vmatprep.subr.mxu0 0.0
        %582 = vmatpush2.msra.mxu0 0.0
        %583 = vmatprep.subr.mxu0 0.0
        %584 = vmatpush2.msra.mxu0 0.0
        %585 = vmatprep.subr.mxu0 0.0
        %586 = vmatpush2.msra.mxu0 0.0
        %587 = vmatprep.subr.mxu0 0.0
        %588 = vmatpush2.msra.mxu0 0.0
        %589 = vmatprep.subr.mxu0 0.0
        %590 = vmatpush2.msra.mxu0 0.0
        %591 = vmatprep.mubr.f32.mxu0 0.0
        %592 = vmatmul.mubr.f32.gmra.mxu0 %v520
        %v593 = vpop.f32.mrf.mxu0
        %v594 = vadd.f32 0.0, %v593
        %v595 = vpop.f32.mrf.mxu0
        %v596 = vadd.f32 0.0, %v595
        %597 = vdwg.mxu0
        %598 = vmatprep.subr.mxu0 0.0
        %599 = vmatpush1.msra.mxu0 %v512
        %600 = vmatprep.subr.mxu0 0.0
        %601 = vmatpush1.msra.mxu0 %v509
        %602 = vmatprep.subr.mxu0 0.0
        %603 = vmatpush1.msra.mxu0 %v506
        %604 = vmatprep.subr.mxu0 0.0
        %605 = vmatpush1.msra.mxu0 %v503
        %606 = vmatprep.subr.mxu0 0.0
        %607 = vmatpush1.msra.mxu0 %v500
        %608 = vmatprep.subr.mxu0 0.0
        %609 = vmatpush1.msra.mxu0 %v497
        %610 = vmatprep.subr.mxu0 0.0
        %611 = vmatpush1.msra.mxu0 %v494
        %612 = vmatprep.subr.mxu0 0.0
        %613 = vmatpush1.msra.mxu0 %v491
        %614 = vmatprep.subr.mxu0 0.0
        %615 = vmatpush1.msra.mxu0 %v488
        %616 = vmatprep.subr.mxu0 0.0
        %617 = vmatpush1.msra.mxu0 %v485
        %618 = vmatprep.subr.mxu0 0.0
        %619 = vmatpush1.msra.mxu0 %v482
        %620 = vmatprep.subr.mxu0 0.0
        %621 = vmatpush1.msra.mxu0 %v479
        %622 = vmatprep.subr.mxu0 0.0
        %623 = vmatpush1.msra.mxu0 %v476
        %624 = vmatprep.subr.mxu0 0.0
        %625 = vmatpush1.msra.mxu0 %v473
        %626 = vmatprep.subr.mxu0 0.0
        %627 = vmatpush1.msra.mxu0 %v470
        %628 = vmatprep.subr.mxu0 0.0
        %629 = vmatpush1.msra.mxu0 %v467
        %630 = vmatprep.subr.mxu0 0.0
        %631 = vmatpush2.msra.mxu0 0.0
        %632 = vmatprep.subr.mxu0 0.0
        %633 = vmatpush2.msra.mxu0 0.0
        %634 = vmatprep.subr.mxu0 0.0
        %635 = vmatpush2.msra.mxu0 0.0
        %636 = vmatprep.subr.mxu0 0.0
        %637 = vmatpush2.msra.mxu0 0.0
        %638 = vmatprep.subr.mxu0 0.0
        %639 = vmatpush2.msra.mxu0 0.0
        %640 = vmatprep.subr.mxu0 0.0
        %641 = vmatpush2.msra.mxu0 0.0
        %642 = vmatprep.subr.mxu0 0.0
        %643 = vmatpush2.msra.mxu0 0.0
        %644 = vmatprep.subr.mxu0 0.0
        %645 = vmatpush2.msra.mxu0 0.0
        %646 = vmatprep.subr.mxu0 0.0
        %647 = vmatpush2.msra.mxu0 0.0
        %648 = vmatprep.subr.mxu0 0.0
        %649 = vmatpush2.msra.mxu0 0.0
        %650 = vmatprep.subr.mxu0 0.0
        %651 = vmatpush2.msra.mxu0 0.0
        %652 = vmatprep.subr.mxu0 0.0
        %653 = vmatpush2.msra.mxu0 0.0
        %654 = vmatprep.subr.mxu0 0.0
        %655 = vmatpush2.msra.mxu0 0.0
        %656 = vmatprep.subr.mxu0 0.0
        %657 = vmatpush2.msra.mxu0 0.0
        %658 = vmatprep.subr.mxu0 0.0
        %659 = vmatpush2.msra.mxu0 0.0
        %660 = vmatprep.subr.mxu0 0.0
        %661 = vmatpush2.msra.mxu0 0.0
        %662 = vmatprep.mubr.f32.mxu0 0.0
        %663 = vmatmul.mubr.f32.gmra.mxu0 %v520
        %v664 = vpop.f32.mrf.mxu0
        %v665 = vadd.f32 0.0, %v664
        %v666 = vpop.f32.mrf.mxu0
        %667 = vdwg.mxu0
        %v668 = vadd.f32 %v524, %v594
        %v669 = vxor.u32 %v668, 2147483648
        %v670 = vmul.f32 %v669, 1.442695
        %v671 = vpow.pop %v670
        %v672 = vadd.f32 %v671, 1.0
        %v673 = vrcp.pop %v672
        %v674 = vmul.f32 1.0, %v673
        %v675 = vadd.f32 %v525, %v596
        %v676 = vxor.u32 %v675, 2147483648
        %v677 = vmul.f32 %v676, 1.442695
        %v678 = vpow.pop %v677
        %v679 = vadd.f32 %v678, 1.0
        %v680 = vrcp.pop %v679
        %v681 = vmul.f32 1.0, %v680
        %v682 = vadd.f32 %v665, %v518
        %v683 = vmul.f32 %v674, %v682
        %v684 = vadd.f32 %v526, %v683
        %v685 = vtanh.pop %v684
        %v686 = vsub.f32 1.0, %v681
        %v687 = vmul.f32 %v686, %v685
        %v688 = vmul.f32 %v681, %v520
        %v689 = vadd.f32 %v687, %v688
        %s690 = smul.u32 1, 3
        %s691 = smul.addr %s690, 8
        %s692 = scalar_lea.vmem [#allocation3], %s691
        %v693 = vld [vmem:[%s692] sm:$0xff]
        %v694 = vld [vmem:[%s692 + $0x8] sm:$0xff]
        %v695 = vld [vmem:[%s692 + $0x10] sm:$0xff]
        %696 = vmatprep.subr.mxu0 %v511
        %697 = vmatpush1.msra.mxu0 %v510
        %698 = vmatprep.subr.mxu0 %v508
        %699 = vmatpush1.msra.mxu0 %v507
        %700 = vmatprep.subr.mxu0 %v505
        %701 = vmatpush1.msra.mxu0 %v504
        %702 = vmatprep.subr.mxu0 %v502
        %703 = vmatpush1.msra.mxu0 %v501
        %704 = vmatprep.subr.mxu0 %v499
        %705 = vmatpush1.msra.mxu0 %v498
        %706 = vmatprep.subr.mxu0 %v496
        %707 = vmatpush1.msra.mxu0 %v495
        %708 = vmatprep.subr.mxu0 %v493
        %709 = vmatpush1.msra.mxu0 %v492
        %710 = vmatprep.subr.mxu0 %v490
        %711 = vmatpush1.msra.mxu0 %v489
        %712 = vmatprep.subr.mxu0 %v487
        %713 = vmatpush1.msra.mxu0 %v486
        %714 = vmatprep.subr.mxu0 %v484
        %715 = vmatpush1.msra.mxu0 %v483
        %716 = vmatprep.subr.mxu0 %v481
        %717 = vmatpush1.msra.mxu0 %v480
        %718 = vmatprep.subr.mxu0 %v478
        %719 = vmatpush1.msra.mxu0 %v477
        %720 = vmatprep.subr.mxu0 %v475
        %721 = vmatpush1.msra.mxu0 %v474
        %722 = vmatprep.subr.mxu0 %v472
        %723 = vmatpush1.msra.mxu0 %v471
        %724 = vmatprep.subr.mxu0 %v469
        %725 = vmatpush1.msra.mxu0 %v468
        %726 = vmatprep.subr.mxu0 %v466
        %727 = vmatpush1.msra.mxu0 %v465
        %728 = vmatprep.subr.mxu0 0.0
        %729 = vmatpush2.msra.mxu0 0.0
        %730 = vmatprep.subr.mxu0 0.0
        %731 = vmatpush2.msra.mxu0 0.0
        %732 = vmatprep.subr.mxu0 0.0
        %733 = vmatpush2.msra.mxu0 0.0
        %734 = vmatprep.subr.mxu0 0.0
        %735 = vmatpush2.msra.mxu0 0.0
        %736 = vmatprep.subr.mxu0 0.0
        %737 = vmatpush2.msra.mxu0 0.0
        %738 = vmatprep.subr.mxu0 0.0
        %739 = vmatpush2.msra.mxu0 0.0
        %740 = vmatprep.subr.mxu0 0.0
        %741 = vmatpush2.msra.mxu0 0.0
        %742 = vmatprep.subr.mxu0 0.0
        %743 = vmatpush2.msra.mxu0 0.0
        %744 = vmatprep.subr.mxu0 0.0
        %745 = vmatpush2.msra.mxu0 0.0
        %746 = vmatprep.subr.mxu0 0.0
        %747 = vmatpush2.msra.mxu0 0.0
        %748 = vmatprep.subr.mxu0 0.0
        %749 = vmatpush2.msra.mxu0 0.0
        %750 = vmatprep.subr.mxu0 0.0
        %751 = vmatpush2.msra.mxu0 0.0
        %752 = vmatprep.subr.mxu0 0.0
        %753 = vmatpush2.msra.mxu0 0.0
        %754 = vmatprep.subr.mxu0 0.0
        %755 = vmatpush2.msra.mxu0 0.0
        %756 = vmatprep.subr.mxu0 0.0
        %757 = vmatpush2.msra.mxu0 0.0
        %758 = vmatprep.subr.mxu0 0.0
        %759 = vmatpush2.msra.mxu0 0.0
        %760 = vmatprep.mubr.f32.mxu0 0.0
        %761 = vmatmul.mubr.f32.gmra.mxu0 %v689
        %v762 = vpop.f32.mrf.mxu0
        %v763 = vadd.f32 0.0, %v762
        %v764 = vpop.f32.mrf.mxu0
        %v765 = vadd.f32 0.0, %v764
        %766 = vdwg.mxu0
        %767 = vmatprep.subr.mxu0 0.0
        %768 = vmatpush1.msra.mxu0 %v512
        %769 = vmatprep.subr.mxu0 0.0
        %770 = vmatpush1.msra.mxu0 %v509
        %771 = vmatprep.subr.mxu0 0.0
        %772 = vmatpush1.msra.mxu0 %v506
        %773 = vmatprep.subr.mxu0 0.0
        %774 = vmatpush1.msra.mxu0 %v503
        %775 = vmatprep.subr.mxu0 0.0
        %776 = vmatpush1.msra.mxu0 %v500
        %777 = vmatprep.subr.mxu0 0.0
        %778 = vmatpush1.msra.mxu0 %v497
        %779 = vmatprep.subr.mxu0 0.0
        %780 = vmatpush1.msra.mxu0 %v494
        %781 = vmatprep.subr.mxu0 0.0
        %782 = vmatpush1.msra.mxu0 %v491
        %783 = vmatprep.subr.mxu0 0.0
        %784 = vmatpush1.msra.mxu0 %v488
        %785 = vmatprep.subr.mxu0 0.0
        %786 = vmatpush1.msra.mxu0 %v485
        %787 = vmatprep.subr.mxu0 0.0
        %788 = vmatpush1.msra.mxu0 %v482
        %789 = vmatprep.subr.mxu0 0.0
        %790 = vmatpush1.msra.mxu0 %v479
        %791 = vmatprep.subr.mxu0 0.0
        %792 = vmatpush1.msra.mxu0 %v476
        %793 = vmatprep.subr.mxu0 0.0
        %794 = vmatpush1.msra.mxu0 %v473
        %795 = vmatprep.subr.mxu0 0.0
        %796 = vmatpush1.msra.mxu0 %v470
        %797 = vmatprep.subr.mxu0 0.0
        %798 = vmatpush1.msra.mxu0 %v467
        %799 = vmatprep.subr.mxu0 0.0
        %800 = vmatpush2.msra.mxu0 0.0
        %801 = vmatprep.subr.mxu0 0.0
        %802 = vmatpush2.msra.mxu0 0.0
        %803 = vmatprep.subr.mxu0 0.0
        %804 = vmatpush2.msra.mxu0 0.0
        %805 = vmatprep.subr.mxu0 0.0
        %806 = vmatpush2.msra.mxu0 0.0
        %807 = vmatprep.subr.mxu0 0.0
        %808 = vmatpush2.msra.mxu0 0.0
        %809 = vmatprep.subr.mxu0 0.0
        %810 = vmatpush2.msra.mxu0 0.0
        %811 = vmatprep.subr.mxu0 0.0
        %812 = vmatpush2.msra.mxu0 0.0
        %813 = vmatprep.subr.mxu0 0.0
        %814 = vmatpush2.msra.mxu0 0.0
        %815 = vmatprep.subr.mxu0 0.0
        %816 = vmatpush2.msra.mxu0 0.0
        %817 = vmatprep.subr.mxu0 0.0
        %818 = vmatpush2.msra.mxu0 0.0
        %819 = vmatprep.subr.mxu0 0.0
        %820 = vmatpush2.msra.mxu0 0.0
        %821 = vmatprep.subr.mxu0 0.0
        %822 = vmatpush2.msra.mxu0 0.0
        %823 = vmatprep.subr.mxu0 0.0
        %824 = vmatpush2.msra.mxu0 0.0
        %825 = vmatprep.subr.mxu0 0.0
        %826 = vmatpush2.msra.mxu0 0.0
        %827 = vmatprep.subr.mxu0 0.0
        %828 = vmatpush2.msra.mxu0 0.0
        %829 = vmatprep.subr.mxu0 0.0
        %830 = vmatpush2.msra.mxu0 0.0
        %831 = vmatprep.mubr.f32.mxu0 0.0
        %832 = vmatmul.mubr.f32.gmra.mxu0 %v689
        %v833 = vpop.f32.mrf.mxu0
        %v834 = vadd.f32 0.0, %v833
        %v835 = vpop.f32.mrf.mxu0
        %836 = vdwg.mxu0
        %v837 = vadd.f32 %v693, %v763
        %v838 = vxor.u32 %v837, 2147483648
        %v839 = vmul.f32 %v838, 1.442695
        %v840 = vpow.pop %v839
        %v841 = vadd.f32 %v840, 1.0
        %v842 = vrcp.pop %v841
        %v843 = vmul.f32 1.0, %v842
        %v844 = vadd.f32 %v694, %v765
        %v845 = vxor.u32 %v844, 2147483648
        %v846 = vmul.f32 %v845, 1.442695
        %v847 = vpow.pop %v846
        %v848 = vadd.f32 %v847, 1.0
        %v849 = vrcp.pop %v848
        %v850 = vmul.f32 1.0, %v849
        %v851 = vadd.f32 %v834, %v518
        %v852 = vmul.f32 %v843, %v851
        %v853 = vadd.f32 %v695, %v852
        %v854 = vtanh.pop %v853
        %v855 = vsub.f32 1.0, %v850
        %v856 = vmul.f32 %v855, %v854
        %v857 = vmul.f32 %v850, %v689
        %v858 = vadd.f32 %v856, %v857
        %s859 = smul.u32 2, 3
        %s860 = smul.addr %s859, 8
        %s861 = scalar_lea.vmem [#allocation3], %s860
        %v862 = vld [vmem:[%s861] sm:$0xff]
        %v863 = vld [vmem:[%s861 + $0x8] sm:$0xff]
        %v864 = vld [vmem:[%s861 + $0x10] sm:$0xff]
        %865 = vmatprep.subr.mxu0 %v511
        %866 = vmatpush1.msra.mxu0 %v510
        %867 = vmatprep.subr.mxu0 %v508
        %868 = vmatpush1.msra.mxu0 %v507
        %869 = vmatprep.subr.mxu0 %v505
        %870 = vmatpush1.msra.mxu0 %v504
        %871 = vmatprep.subr.mxu0 %v502
        %872 = vmatpush1.msra.mxu0 %v501
        %873 = vmatprep.subr.mxu0 %v499
        %874 = vmatpush1.msra.mxu0 %v498
        %875 = vmatprep.subr.mxu0 %v496
        %876 = vmatpush1.msra.mxu0 %v495
        %877 = vmatprep.subr.mxu0 %v493
        %878 = vmatpush1.msra.mxu0 %v492
        %879 = vmatprep.subr.mxu0 %v490
        %880 = vmatpush1.msra.mxu0 %v489
        %881 = vmatprep.subr.mxu0 %v487
        %882 = vmatpush1.msra.mxu0 %v486
        %883 = vmatprep.subr.mxu0 %v484
        %884 = vmatpush1.msra.mxu0 %v483
        %885 = vmatprep.subr.mxu0 %v481
        %886 = vmatpush1.msra.mxu0 %v480
        %887 = vmatprep.subr.mxu0 %v478
        %888 = vmatpush1.msra.mxu0 %v477
        %889 = vmatprep.subr.mxu0 %v475
        %890 = vmatpush1.msra.mxu0 %v474
        %891 = vmatprep.subr.mxu0 %v472
        %892 = vmatpush1.msra.mxu0 %v471
        %893 = vmatprep.subr.mxu0 %v469
        %894 = vmatpush1.msra.mxu0 %v468
        %895 = vmatprep.subr.mxu0 %v466
        %896 = vmatpush1.msra.mxu0 %v465
        %897 = vmatprep.subr.mxu0 0.0
        %898 = vmatpush2.msra.mxu0 0.0
        %899 = vmatprep.subr.mxu0 0.0
        %900 = vmatpush2.msra.mxu0 0.0
        %901 = vmatprep.subr.mxu0 0.0
        %902 = vmatpush2.msra.mxu0 0.0
        %903 = vmatprep.subr.mxu0 0.0
        %904 = vmatpush2.msra.mxu0 0.0
        %905 = vmatprep.subr.mxu0 0.0
        %906 = vmatpush2.msra.mxu0 0.0
        %907 = vmatprep.subr.mxu0 0.0
        %908 = vmatpush2.msra.mxu0 0.0
        %909 = vmatprep.subr.mxu0 0.0
        %910 = vmatpush2.msra.mxu0 0.0
        %911 = vmatprep.subr.mxu0 0.0
        %912 = vmatpush2.msra.mxu0 0.0
        %913 = vmatprep.subr.mxu0 0.0
        %914 = vmatpush2.msra.mxu0 0.0
        %915 = vmatprep.subr.mxu0 0.0
        %916 = vmatpush2.msra.mxu0 0.0
        %917 = vmatprep.subr.mxu0 0.0
        %918 = vmatpush2.msra.mxu0 0.0
        %919 = vmatprep.subr.mxu0 0.0
        %920 = vmatpush2.msra.mxu0 0.0
        %921 = vmatprep.subr.mxu0 0.0
        %922 = vmatpush2.msra.mxu0 0.0
        %923 = vmatprep.subr.mxu0 0.0
        %924 = vmatpush2.msra.mxu0 0.0
        %925 = vmatprep.subr.mxu0 0.0
        %926 = vmatpush2.msra.mxu0 0.0
        %927 = vmatprep.subr.mxu0 0.0
        %928 = vmatpush2.msra.mxu0 0.0
        %929 = vmatprep.mubr.f32.mxu0 0.0
        %930 = vmatmul.mubr.f32.gmra.mxu0 %v858
        %v931 = vpop.f32.mrf.mxu0
        %v932 = vadd.f32 0.0, %v931
        %v933 = vpop.f32.mrf.mxu0
        %v934 = vadd.f32 0.0, %v933
        %935 = vdwg.mxu0
        %936 = vmatprep.subr.mxu0 0.0
        %937 = vmatpush1.msra.mxu0 %v512
        %938 = vmatprep.subr.mxu0 0.0
        %939 = vmatpush1.msra.mxu0 %v509
        %940 = vmatprep.subr.mxu0 0.0
        %941 = vmatpush1.msra.mxu0 %v506
        %942 = vmatprep.subr.mxu0 0.0
        %943 = vmatpush1.msra.mxu0 %v503
        %944 = vmatprep.subr.mxu0 0.0
        %945 = vmatpush1.msra.mxu0 %v500
        %946 = vmatprep.subr.mxu0 0.0
        %947 = vmatpush1.msra.mxu0 %v497
        %948 = vmatprep.subr.mxu0 0.0
        %949 = vmatpush1.msra.mxu0 %v494
        %950 = vmatprep.subr.mxu0 0.0
        %951 = vmatpush1.msra.mxu0 %v491
        %952 = vmatprep.subr.mxu0 0.0
        %953 = vmatpush1.msra.mxu0 %v488
        %954 = vmatprep.subr.mxu0 0.0
        %955 = vmatpush1.msra.mxu0 %v485
        %956 = vmatprep.subr.mxu0 0.0
        %957 = vmatpush1.msra.mxu0 %v482
        %958 = vmatprep.subr.mxu0 0.0
        %959 = vmatpush1.msra.mxu0 %v479
        %960 = vmatprep.subr.mxu0 0.0
        %961 = vmatpush1.msra.mxu0 %v476
        %962 = vmatprep.subr.mxu0 0.0
        %963 = vmatpush1.msra.mxu0 %v473
        %964 = vmatprep.subr.mxu0 0.0
        %965 = vmatpush1.msra.mxu0 %v470
        %966 = vmatprep.subr.mxu0 0.0
        %967 = vmatpush1.msra.mxu0 %v467
        %968 = vmatprep.subr.mxu0 0.0
        %969 = vmatpush2.msra.mxu0 0.0
        %970 = vmatprep.subr.mxu0 0.0
        %971 = vmatpush2.msra.mxu0 0.0
        %972 = vmatprep.subr.mxu0 0.0
        %973 = vmatpush2.msra.mxu0 0.0
        %974 = vmatprep.subr.mxu0 0.0
        %975 = vmatpush2.msra.mxu0 0.0
        %976 = vmatprep.subr.mxu0 0.0
        %977 = vmatpush2.msra.mxu0 0.0
        %978 = vmatprep.subr.mxu0 0.0
        %979 = vmatpush2.msra.mxu0 0.0
        %980 = vmatprep.subr.mxu0 0.0
        %981 = vmatpush2.msra.mxu0 0.0
        %982 = vmatprep.subr.mxu0 0.0
        %983 = vmatpush2.msra.mxu0 0.0
        %984 = vmatprep.subr.mxu0 0.0
        %985 = vmatpush2.msra.mxu0 0.0
        %986 = vmatprep.subr.mxu0 0.0
        %987 = vmatpush2.msra.mxu0 0.0
        %988 = vmatprep.subr.mxu0 0.0
        %989 = vmatpush2.msra.mxu0 0.0
        %990 = vmatprep.subr.mxu0 0.0
        %991 = vmatpush2.msra.mxu0 0.0
        %992 = vmatprep.subr.mxu0 0.0
        %993 = vmatpush2.msra.mxu0 0.0
        %994 = vmatprep.subr.mxu0 0.0
        %995 = vmatpush2.msra.mxu0 0.0
        %996 = vmatprep.subr.mxu0 0.0
        %997 = vmatpush2.msra.mxu0 0.0
        %998 = vmatprep.subr.mxu0 0.0
        %999 = vmatpush2.msra.mxu0 0.0
        %1000 = vmatprep.mubr.f32.mxu0 0.0
        %1001 = vmatmul.mubr.f32.gmra.mxu0 %v858
        %v1002 = vpop.f32.mrf.mxu0
        %v1003 = vadd.f32 0.0, %v1002
        %v1004 = vpop.f32.mrf.mxu0
        %1005 = vdwg.mxu0
        %v1006 = vadd.f32 %v862, %v932
        %v1007 = vxor.u32 %v1006, 2147483648
        %v1008 = vmul.f32 %v1007, 1.442695
        %v1009 = vpow.pop %v1008
        %v1010 = vadd.f32 %v1009, 1.0
        %v1011 = vrcp.pop %v1010
        %v1012 = vmul.f32 1.0, %v1011
        %v1013 = vadd.f32 %v863, %v934
        %v1014 = vxor.u32 %v1013, 2147483648
        %v1015 = vmul.f32 %v1014, 1.442695
        %v1016 = vpow.pop %v1015
        %v1017 = vadd.f32 %v1016, 1.0
        %v1018 = vrcp.pop %v1017
        %v1019 = vmul.f32 1.0, %v1018
        %v1020 = vadd.f32 %v1003, %v518
        %v1021 = vmul.f32 %v1012, %v1020
        %v1022 = vadd.f32 %v864, %v1021
        %v1023 = vtanh.pop %v1022
        %v1024 = vsub.f32 1.0, %v1019
        %v1025 = vmul.f32 %v1024, %v1023
        %v1026 = vmul.f32 %v1019, %v858
        %v1027 = vadd.f32 %v1025, %v1026
        %s1028 = smul.u32 3, 3
        %s1029 = smul.addr %s1028, 8
        %s1030 = scalar_lea.vmem [#allocation3], %s1029
        %v1031 = vld [vmem:[%s1030] sm:$0xff]
        %v1032 = vld [vmem:[%s1030 + $0x8] sm:$0xff]
        %v1033 = vld [vmem:[%s1030 + $0x10] sm:$0xff]
        %1034 = vmatprep.subr.mxu0 %v511
        %1035 = vmatpush1.msra.mxu0 %v510
        %1036 = vmatprep.subr.mxu0 %v508
        %1037 = vmatpush1.msra.mxu0 %v507
        %1038 = vmatprep.subr.mxu0 %v505
        %1039 = vmatpush1.msra.mxu0 %v504
        %1040 = vmatprep.subr.mxu0 %v502
        %1041 = vmatpush1.msra.mxu0 %v501
        %1042 = vmatprep.subr.mxu0 %v499
        %1043 = vmatpush1.msra.mxu0 %v498
        %1044 = vmatprep.subr.mxu0 %v496
        %1045 = vmatpush1.msra.mxu0 %v495
        %1046 = vmatprep.subr.mxu0 %v493
        %1047 = vmatpush1.msra.mxu0 %v492
        %1048 = vmatprep.subr.mxu0 %v490
        %1049 = vmatpush1.msra.mxu0 %v489
        %1050 = vmatprep.subr.mxu0 %v487
        %1051 = vmatpush1.msra.mxu0 %v486
        %1052 = vmatprep.subr.mxu0 %v484
        %1053 = vmatpush1.msra.mxu0 %v483
        %1054 = vmatprep.subr.mxu0 %v481
        %1055 = vmatpush1.msra.mxu0 %v480
        %1056 = vmatprep.subr.mxu0 %v478
        %1057 = vmatpush1.msra.mxu0 %v477
        %1058 = vmatprep.subr.mxu0 %v475
        %1059 = vmatpush1.msra.mxu0 %v474
        %1060 = vmatprep.subr.mxu0 %v472
        %1061 = vmatpush1.msra.mxu0 %v471
        %1062 = vmatprep.subr.mxu0 %v469
        %1063 = vmatpush1.msra.mxu0 %v468
        %1064 = vmatprep.subr.mxu0 %v466
        %1065 = vmatpush1.msra.mxu0 %v465
        %1066 = vmatprep.subr.mxu0 0.0
        %1067 = vmatpush2.msra.mxu0 0.0
        %1068 = vmatprep.subr.mxu0 0.0
        %1069 = vmatpush2.msra.mxu0 0.0
        %1070 = vmatprep.subr.mxu0 0.0
        %1071 = vmatpush2.msra.mxu0 0.0
        %1072 = vmatprep.subr.mxu0 0.0
        %1073 = vmatpush2.msra.mxu0 0.0
        %1074 = vmatprep.subr.mxu0 0.0
        %1075 = vmatpush2.msra.mxu0 0.0
        %1076 = vmatprep.subr.mxu0 0.0
        %1077 = vmatpush2.msra.mxu0 0.0
        %1078 = vmatprep.subr.mxu0 0.0
        %1079 = vmatpush2.msra.mxu0 0.0
        %1080 = vmatprep.subr.mxu0 0.0
        %1081 = vmatpush2.msra.mxu0 0.0
        %1082 = vmatprep.subr.mxu0 0.0
        %1083 = vmatpush2.msra.mxu0 0.0
        %1084 = vmatprep.subr.mxu0 0.0
        %1085 = vmatpush2.msra.mxu0 0.0
        %1086 = vmatprep.subr.mxu0 0.0
        %1087 = vmatpush2.msra.mxu0 0.0
        %1088 = vmatprep.subr.mxu0 0.0
        %1089 = vmatpush2.msra.mxu0 0.0
        %1090 = vmatprep.subr.mxu0 0.0
        %1091 = vmatpush2.msra.mxu0 0.0
        %1092 = vmatprep.subr.mxu0 0.0
        %1093 = vmatpush2.msra.mxu0 0.0
        %1094 = vmatprep.subr.mxu0 0.0
        %1095 = vmatpush2.msra.mxu0 0.0
        %1096 = vmatprep.subr.mxu0 0.0
        %1097 = vmatpush2.msra.mxu0 0.0
        %1098 = vmatprep.mubr.f32.mxu0 0.0
        %1099 = vmatmul.mubr.f32.gmra.mxu0 %v1027
        %v1100 = vpop.f32.mrf.mxu0
        %v1101 = vadd.f32 0.0, %v1100
        %v1102 = vpop.f32.mrf.mxu0
        %v1103 = vadd.f32 0.0, %v1102
        %1104 = vdwg.mxu0
        %1105 = vmatprep.subr.mxu0 0.0
        %1106 = vmatpush1.msra.mxu0 %v512
        %1107 = vmatprep.subr.mxu0 0.0
        %1108 = vmatpush1.msra.mxu0 %v509
        %1109 = vmatprep.subr.mxu0 0.0
        %1110 = vmatpush1.msra.mxu0 %v506
        %1111 = vmatprep.subr.mxu0 0.0
        %1112 = vmatpush1.msra.mxu0 %v503
        %1113 = vmatprep.subr.mxu0 0.0
        %1114 = vmatpush1.msra.mxu0 %v500
        %1115 = vmatprep.subr.mxu0 0.0
        %1116 = vmatpush1.msra.mxu0 %v497
        %1117 = vmatprep.subr.mxu0 0.0
        %1118 = vmatpush1.msra.mxu0 %v494
        %1119 = vmatprep.subr.mxu0 0.0
        %1120 = vmatpush1.msra.mxu0 %v491
        %1121 = vmatprep.subr.mxu0 0.0
        %1122 = vmatpush1.msra.mxu0 %v488
        %1123 = vmatprep.subr.mxu0 0.0
        %1124 = vmatpush1.msra.mxu0 %v485
        %1125 = vmatprep.subr.mxu0 0.0
        %1126 = vmatpush1.msra.mxu0 %v482
        %1127 = vmatprep.subr.mxu0 0.0
        %1128 = vmatpush1.msra.mxu0 %v479
        %1129 = vmatprep.subr.mxu0 0.0
        %1130 = vmatpush1.msra.mxu0 %v476
        %1131 = vmatprep.subr.mxu0 0.0
        %1132 = vmatpush1.msra.mxu0 %v473
        %1133 = vmatprep.subr.mxu0 0.0
        %1134 = vmatpush1.msra.mxu0 %v470
        %1135 = vmatprep.subr.mxu0 0.0
        %1136 = vmatpush1.msra.mxu0 %v467
        %1137 = vmatprep.subr.mxu0 0.0
        %1138 = vmatpush2.msra.mxu0 0.0
        %1139 = vmatprep.subr.mxu0 0.0
        %1140 = vmatpush2.msra.mxu0 0.0
        %1141 = vmatprep.subr.mxu0 0.0
        %1142 = vmatpush2.msra.mxu0 0.0
        %1143 = vmatprep.subr.mxu0 0.0
        %1144 = vmatpush2.msra.mxu0 0.0
        %1145 = vmatprep.subr.mxu0 0.0
        %1146 = vmatpush2.msra.mxu0 0.0
        %1147 = vmatprep.subr.mxu0 0.0
        %1148 = vmatpush2.msra.mxu0 0.0
        %1149 = vmatprep.subr.mxu0 0.0
        %1150 = vmatpush2.msra.mxu0 0.0
        %1151 = vmatprep.subr.mxu0 0.0
        %1152 = vmatpush2.msra.mxu0 0.0
        %1153 = vmatprep.subr.mxu0 0.0
        %1154 = vmatpush2.msra.mxu0 0.0
        %1155 = vmatprep.subr.mxu0 0.0
        %1156 = vmatpush2.msra.mxu0 0.0
        %1157 = vmatprep.subr.mxu0 0.0
        %1158 = vmatpush2.msra.mxu0 0.0
        %1159 = vmatprep.subr.mxu0 0.0
        %1160 = vmatpush2.msra.mxu0 0.0
        %1161 = vmatprep.subr.mxu0 0.0
        %1162 = vmatpush2.msra.mxu0 0.0
        %1163 = vmatprep.subr.mxu0 0.0
        %1164 = vmatpush2.msra.mxu0 0.0
        %1165 = vmatprep.subr.mxu0 0.0
        %1166 = vmatpush2.msra.mxu0 0.0
        %1167 = vmatprep.subr.mxu0 0.0
        %1168 = vmatpush2.msra.mxu0 0.0
        %1169 = vmatprep.mubr.f32.mxu0 0.0
        %1170 = vmatmul.mubr.f32.gmra.mxu0 %v1027
        %v1171 = vpop.f32.mrf.mxu0
        %v1172 = vadd.f32 0.0, %v1171
        %v1173 = vpop.f32.mrf.mxu0
        %1174 = vdwg.mxu0
        %v1175 = vadd.f32 %v1031, %v1101
        %v1176 = vxor.u32 %v1175, 2147483648
        %v1177 = vmul.f32 %v1176, 1.442695
        %v1178 = vpow.pop %v1177
        %v1179 = vadd.f32 %v1178, 1.0
        %v1180 = vrcp.pop %v1179
        %v1181 = vmul.f32 1.0, %v1180
        %v1182 = vadd.f32 %v1032, %v1103
        %v1183 = vxor.u32 %v1182, 2147483648
        %v1184 = vmul.f32 %v1183, 1.442695
        %v1185 = vpow.pop %v1184
        %v1186 = vadd.f32 %v1185, 1.0
        %v1187 = vrcp.pop %v1186
        %v1188 = vmul.f32 1.0, %v1187
        %v1189 = vadd.f32 %v1172, %v518
        %v1190 = vmul.f32 %v1181, %v1189
        %v1191 = vadd.f32 %v1033, %v1190
        %v1192 = vtanh.pop %v1191
        %v1193 = vsub.f32 1.0, %v1188
        %v1194 = vmul.f32 %v1193, %v1192
        %v1195 = vmul.f32 %v1188, %v1027
        %v1196 = vadd.f32 %v1194, %v1195
        %1197 = vst [vmem:[#allocation2] sm:$0xff] %v1196
        %1198 = vst [vmem:[#allocation7] sm:$0xff] %v1196
        // Predicated region
        $region49: #{tpu_custom_call.1} parent=39 // pred_check
          %p1199 = pneg %p141
        $region50: #{tpu_custom_call.1} parent=39 // pred_check_branch
          %1201 = sbr.rel (%p1199) target = $region52
        $region51: #{tpu_custom_call.1} parent=39 // pred_region
          %s1203 = ssub.s32 128, 128
          %1204 = vsyncadd [#allocation6], %s1203
          %s1206 = sshll.u32 [#allocation7], 4
          %s1207 = int_to_ptr.vmem [resolvable:$true] %s1206
          %1209 = dma.vmem_to_hbm [thread:$0]  %s1207, 128, %s5, [#allocation6]
        $region52: #{tpu_custom_call.1} parent=39 // pred_fallthru
          _
        // Predicated region
        $region53: #{tpu_custom_call.1} parent=39 // pred_check
          %p1210 = pneg %p141
        $region54: #{tpu_custom_call.1} parent=39 // pred_check_branch
          %1212 = sbr.rel (%p1210) target = $region56
        $region55: #{tpu_custom_call.1} parent=39 // pred_region
          %1213 = dma.done [#allocation6], 128
        $region56: #{tpu_custom_call.1} parent=39 // pred_fallthru
          _
      $region40: #{tpu_custom_call.1} parent=5 // pred_fallthru
        _
      %p1214 = scmp.le.s32.totalorder 2, %s13
      // Predicated region
      $region57: #{tpu_custom_call.1} parent=5 // pred_check
        %p1215 = pneg %p1214
      $region58: #{tpu_custom_call.1} parent=5 // pred_check_branch
        %1217 = sbr.rel (%p1215) target = $region60
      $region59: #{tpu_custom_call.1} parent=5 // pred_region
        %s1218 = ssub.s32 %s13, 2
      $region60: #{tpu_custom_call.1} parent=5 // pred_fallthru
        _
    $region6: #{tpu_custom_call.1} parent=1 // loop_footer
      %s17 = sadd.s32 1, %s13
    $region7: #{tpu_custom_call.1} parent=1 // loop_footer_branch
      %12 = sbr.rel target = $region3
    $region8: #{tpu_custom_call.1} parent=1 // loop_exit
      _
    %1219 = vsyncpa [#allocation5], 1
    %s1220 = scalar_lea.sflag [#allocation5], 1
    %1221 = vsyncpa %s1220, 1
    %1222 = vsyncpa [#allocation6], 1
    %s1223 = scalar_lea.sflag [#allocation6], 1
    %1224 = vsyncpa %s1223, 1

</llo_original>
